<compile_context>
chip_gen: v7x
topology: tpu7x:2x2x1
jax: 0.10.0
libtpu: 0.0.40
codegen_flags: <defaults>
</compile_context>

<pallas_src>
import functools

import jax
import jax.numpy as jnp
import numpy as np
from jax import lax
from jax.experimental import pallas as pl
from jax.experimental.pallas import tpu as pltpu

L_SEQ = 107          # fixed by the module (LayerNorm([C, 107]))
LP = 128             # lane-padded per-batch segment length
EPS = 1e-5           # torch.nn.LayerNorm default


def _round_up(v, m):
    return (v + m - 1) // m * m


def _denser_block_kernel(x_ref, seg_ref, naw_ref, nab_ref, wa_ref, ba_ref,
                         nbw_ref, nbb_ref, wb_ref, bb_ref, out_ref,
                         *, k, pad, cin, cmid):
    n_lanes = x_ref.shape[1]                       # bt * LP
    x = x_ref[...]                                 # (cin_p, n); padded rows/lanes are 0
    seg_ind = seg_ref[...]                         # (bt_p, n) 0/1 per-segment indicator

    lane = lax.broadcasted_iota(jnp.int32, (1, n_lanes), 1)
    valid = (lane % LP) < L_SEQ                    # (1, n)

    def seg_reduce(col_vec):
        # Per-128-lane-segment sum of a (1, n) lane vector -> (1, bt_p).  MXU.
        return lax.dot_general(col_vec, seg_ind, (((1,), (1,)), ((), ())),
                               preferred_element_type=jnp.float32)

    def seg_broadcast(seg_vec):
        # Per-segment scalars (1, bt_p) -> per-lane map (1, n).  MXU.
        return jnp.dot(seg_vec, seg_ind, preferred_element_type=jnp.float32)

    def layernorm_relu(v, w_t, b_t, n_real_ch):
        # Per-batch-segment LayerNorm over (n_real_ch, 107), two-pass variance.
        rows = v.shape[0]
        inv_n = 1.0 / float(n_real_ch * L_SEQ)
        row = lax.broadcasted_iota(jnp.int32, (rows, 1), 0)
        mask = jnp.logical_and(row < n_real_ch, valid)       # exclude padded rows/lanes

        col_sum = jnp.sum(v, axis=0, keepdims=True)           # padded positions are 0
        mean_map = seg_broadcast(seg_reduce(col_sum) * inv_n)  # (1, n)

        c = jnp.where(mask, v - mean_map, 0.0)                 # centered, 0 elsewhere
        col_sq = jnp.sum(c * c, axis=0, keepdims=True)
        inv_std = lax.rsqrt(seg_reduce(col_sq) * inv_n + EPS)  # (1, bt_p)
        inv_map = seg_broadcast(inv_std)                       # (1, n)

        # Affine params are lane-tiled & zero-padded outside the kernel, so padded
        # rows/lanes stay exactly 0 after the affine + ReLU (required by the rolls).
        return jnp.maximum(c * inv_map * w_t + b_t, 0.0)

    def conv1d_same(v, w_flat, b_col):
        # v: (c_p, n); w_flat: (cout_p, k*c_p); b_col: (cout_p, 1)
        taps = []
        for t in range(k):                          # static unroll over taps
            s = (pad - t) % n_lanes
            taps.append(v if s == 0 else pltpu.roll(v, shift=s, axis=1))
        # Rolls cannot leak real data across batch segments: lanes 107..127 of every
        # segment are zero at every stage, and output lanes >= 107 are masked below.
        stacked = jnp.concatenate(taps, axis=0)     # (k*c_p, n), 8-aligned rows
        z = jnp.dot(w_flat, stacked, preferred_element_type=jnp.float32)
        return jnp.where(valid, z + b_col, 0.0)

    y = layernorm_relu(x, naw_ref[...], nab_ref[...], cin)     # norm_a / act_a
    y = conv1d_same(y, wa_ref[...], ba_ref[...])               # conv1d_a  (cmid_p, n)
    y = layernorm_relu(y, nbw_ref[...], nbb_ref[...], cmid)    # norm_b / act_b
    y = conv1d_same(y, wb_ref[...], bb_ref[...])               # conv1d_b  (g_p, n)
    # TODO(synk): training-mode F.dropout is not implemented (inference / drop_rate==0).

    # Fused torch.cat([x, out], dim=1): one lane-dense, sublane-aligned slab store.
    out_ref[...] = jnp.concatenate([x, y], axis=0)             # (cin_p + g_p, n)


def _tile_for_bt(prep, bt):
    """Lane-tile LN affine params to (rows, bt*128) and build the 0/1 segment
    indicator (bt_p, bt*128).  Hoisted out of the kernel (one-time per bt)."""
    n = bt * LP
    bt_p = _round_up(bt, 8)
    seg = jnp.arange(n, dtype=jnp.int32) // LP
    seg_ind = (jnp.arange(bt_p, dtype=jnp.int32)[:, None] == seg[None, :]
               ).astype(jnp.float32)
    return dict(bt=bt,
                naw=jnp.tile(prep["naw"], (1, bt)),
                nab=jnp.tile(prep["nab"], (1, bt)),
                nbw=jnp.tile(prep["nbw"], (1, bt)),
                nbb=jnp.tile(prep["nbb"], (1, bt)),
                seg_ind=seg_ind)


def prepare_params(params, batch_tile=None):
    """One-time parameter prep: zero-pad, fold conv taps, column biases, and
    (optionally, if batch_tile is given) lane-tile the LN affine params."""
    naw, nab, caw, cab, nbw, nbb, cbw, cbb = params
    cmid, cin, k = caw.shape
    g = cbw.shape[0]
    cin_p = _round_up(cin, 8)
    cmid_p = _round_up(cmid, 8)
    g_p = _round_up(g, 8)

    def pad2(a, rows):
        return jnp.pad(a, ((0, rows - a.shape[0]), (0, LP - a.shape[1])))

    def fold_weight(w, cout_p, cin_pad):
        # (Cout, Cin, K) -> (CoutP, K*CinP); column order [tap major, channel minor]
        wp = jnp.pad(w, ((0, cout_p - w.shape[0]), (0, cin_pad - w.shape[1]), (0, 0)))
        return jnp.transpose(wp, (0, 2, 1)).reshape(cout_p, w.shape[2] * cin_pad)

    prep = dict(
        naw=pad2(naw, cin_p), nab=pad2(nab, cin_p),
        nbw=pad2(nbw, cmid_p), nbb=pad2(nbb, cmid_p),
        wa=fold_weight(caw, cmid_p, cin_p),               # (cmid_p, k*cin_p)
        ba=jnp.pad(cab, (0, cmid_p - cmid))[:, None],     # (cmid_p, 1)
        wb=fold_weight(cbw, g_p, cmid_p),                 # (g_p, k*cmid_p)
        bb=jnp.pad(cbb, (0, g_p - g))[:, None],           # (g_p, 1)
        cin=cin, cmid=cmid, g=g, k=k, cin_p=cin_p, cmid_p=cmid_p, g_p=g_p)
    if batch_tile is not None:
        prep["tiled"] = _tile_for_bt(prep, batch_tile)
    return prep


def denser_conv_block_bottleneck_packed(xs, prep, *, bt):
    """Packed channel-major path: xs (cin_p, Bp*128) -> slab (cin_p+g_p, Bp*128).

    Contract: each 128-lane batch segment has lanes 107..127 and channel rows >=
    the real channel count exactly zero.  The output obeys the same contract, so
    consecutive dense blocks can chain on this layout with no HBM relayout."""
    cin_p, cmid_p, g_p = prep["cin_p"], prep["cmid_p"], prep["g_p"]
    k = prep["k"]
    assert k % 2 == 1, "kernel assumes odd kernel_size (symmetric 'same' padding)"
    pad = (k - 1) // 2
    cout_p = cin_p + g_p
    n = bt * LP
    n_total = xs.shape[1]
    assert xs.shape[0] == cin_p and n_total % n == 0
    n_steps = n_total // n
    bt_p = _round_up(bt, 8)

    tiled = prep.get("tiled")
    if tiled is None or tiled["bt"] != bt:
        tiled = _tile_for_bt(prep, bt)     # outside the kernel; cheap / const-foldable

    kernel = functools.partial(_denser_block_kernel, k=k, pad=pad,
                               cin=prep["cin"], cmid=prep["cmid"])
    grid_spec = pltpu.PrefetchScalarGridSpec(
        num_scalar_prefetch=0,
        grid=(n_steps,),
        in_specs=[
            pl.BlockSpec((cin_p, n), lambda i: (0, i)),       # x slab (varies)
            pl.BlockSpec((bt_p, n), lambda i: (0, 0)),        # segment indicator
            pl.BlockSpec((cin_p, n), lambda i: (0, 0)),       # norm_a weight (tiled)
            pl.BlockSpec((cin_p, n), lambda i: (0, 0)),       # norm_a bias   (tiled)
            pl.BlockSpec((cmid_p, k * cin_p), lambda i: (0, 0)),
            pl.BlockSpec((cmid_p, 1), lambda i: (0, 0)),
            pl.BlockSpec((cmid_p, n), lambda i: (0, 0)),      # norm_b weight (tiled)
            pl.BlockSpec((cmid_p, n), lambda i: (0, 0)),      # norm_b bias   (tiled)
            pl.BlockSpec((g_p, k * cmid_p), lambda i: (0, 0)),
            pl.BlockSpec((g_p, 1), lambda i: (0, 0)),
        ],
        out_specs=pl.BlockSpec((cout_p, n), lambda i: (0, i)),
    )
    # VMEM footprint at bt=32 is ~10 MiB (double-buffered x/out blocks, lane-tiled
    # params, in-kernel tap stacks).  48 MiB stays below v7x's 64 MiB physical VMEM
    # while leaving headroom for bt up to ~96; re-derive if bt is pushed higher.
    return pl.pallas_call(
        kernel,
        out_shape=jax.ShapeDtypeStruct((cout_p, n_total), jnp.float32),
        grid_spec=grid_spec,
        compiler_params=pltpu.CompilerParams(
            dimension_semantics=("parallel",),
            vmem_limit_bytes=48 * 1024 * 1024),
    )(xs, tiled["seg_ind"], tiled["naw"], tiled["nab"], prep["wa"], prep["ba"],
      tiled["nbw"], tiled["nbb"], prep["wb"], prep["bb"])


def denser_conv_block_bottleneck(x, prep, *, batch_tile=None):
    """x: (B, Cin, 107) float32. Returns concat([x, new_features], axis=1)."""
    B, cin, L = x.shape
    assert L == L_SEQ and cin == prep["cin"]
    g, cin_p, g_p = prep["g"], prep["cin_p"], prep["g_p"]
    cout_p = cin_p + g_p

    # Batch tile: fewer, fatter grid steps amortize the ~0.35-0.6us per-step overhead.
    # On v7x keep the grid length >= 2 (and even), e.g. batch_tile=B//2, so both
    # TensorCores get work; on v5e/v6e a single fat step is optimal.
    bt = batch_tile if batch_tile is not None else min(32, B)
    bt = max(1, min(bt, B))
    n_steps = pl.cdiv(B, bt)
    B_pad = n_steps * bt            # remainder handled with zero-padded batch segments

    # TODO(synk): when chaining dense blocks, keep activations in the packed
    # (C_p, B*128) layout via denser_conv_block_bottleneck_packed so this relayout
    # HBM pass and the matching output unpack are elided between blocks.
    xb = x if B_pad == B else jnp.pad(x, ((0, B_pad - B), (0, 0), (0, 0)))
    xt = jnp.pad(jnp.transpose(xb, (1, 0, 2)),
                 ((0, cin_p - cin), (0, 0), (0, LP - L_SEQ)))
    xs = xt.reshape(cin_p, B_pad * LP)

    slab = denser_conv_block_bottleneck_packed(xs, prep, bt=bt)

    # Unpack the padded slab: (cout_p, B_pad*128) -> (B, cin+g, 107).
    slab = slab.reshape(cout_p, B_pad, LP)[:, :B, :L_SEQ]
    out = jnp.concatenate([slab[:cin], slab[cin_p:cin_p + g]], axis=0)
    return jnp.transpose(out, (1, 0, 2))


# ------------------------- pure-JAX reference --------------------------------
def reference_forward(x, params):
    (naw, nab, caw, cab, nbw, nbb, cbw, cbb) = params
    pad = (caw.shape[2] - 1) // 2

    def layernorm(v, w, b):
        mean = jnp.mean(v, axis=(1, 2), keepdims=True)
        var = jnp.var(v, axis=(1, 2), keepdims=True)
        return (v - mean) / jnp.sqrt(var + EPS) * w[None] + b[None]

    def conv1d(v, w, b):
        y = lax.conv_general_dilated(
            v, w, window_strides=(1,), padding=[(pad, pad)],
            dimension_numbers=("NCH", "OIH", "NCH"))
        return y + b[None, :, None]

    out = jnp.maximum(layernorm(x, naw, nab), 0.0)
    out = conv1d(out, caw, cab)
    out = jnp.maximum(layernorm(out, nbw, nbb), 0.0)
    out = conv1d(out, cbw, cbb)
    return jnp.concatenate([x, out], axis=1)


if __name__ == "__main__":
    # Module hyper-params (small, consistent with the forward pass).
    n_inp_features = 4
    growth_rate = 6
    bottle_factor = 4
    kernel_size = 3
    cmid = growth_rate * bottle_factor

    key = jax.random.PRNGKey(0)
    keys = jax.random.split(key, 11)
    x = jax.random.normal(keys[0], (2, n_inp_features, L_SEQ), jnp.float32)

    naw = 1.0 + 0.05 * jax.random.normal(keys[1], (n_inp_features, L_SEQ), jnp.float32)
    nab = 0.05 * jax.random.normal(keys[2], (n_inp_features, L_SEQ), jnp.float32)
    caw = 0.1 * jax.random.normal(keys[3], (cmid, n_inp_features, kernel_size), jnp.float32)
    cab = 0.1 * jax.random.normal(keys[4], (cmid,), jnp.float32)
    nbw = 1.0 + 0.05 * jax.random.normal(keys[5], (cmid, L_SEQ), jnp.float32)
    nbb = 0.05 * jax.random.normal(keys[6], (cmid, L_SEQ), jnp.float32)
    cbw = 0.1 * jax.random.normal(keys[7], (growth_rate, cmid, kernel_size), jnp.float32)
    cbb = 0.1 * jax.random.normal(keys[8], (growth_rate,), jnp.float32)
    params = (naw, nab, caw, cab, nbw, nbb, cbw, cbb)

    prep = prepare_params(params, batch_tile=4)      # one-time prep, pre-tiled for bt=4

    # Case 1: B=2 in one fat grid step (bt=B; falls back to on-the-fly tiling).
    fwd = jax.jit(lambda v: denser_conv_block_bottleneck(v, prep))
    out = jax.block_until_ready(fwd(x))
    ref = jax.block_until_ready(reference_forward(x, params))
    assert out.shape == (2, n_inp_features + growth_rate, L_SEQ), out.shape
    np.testing.assert_allclose(np.asarray(out), np.asarray(ref), rtol=1e-4, atol=1e-4)

    # Case 2: B=8 with bt=4 -> 2 grid steps (uses pre-tiled params; v7x-friendly).
    x8 = jax.random.normal(keys[9], (8, n_inp_features, L_SEQ), jnp.float32)
    fwd8 = jax.jit(lambda v: denser_conv_block_bottleneck(v, prep, batch_tile=4))
    out8 = jax.block_until_ready(fwd8(x8))
    ref8 = jax.block_until_ready(reference_forward(x8, params))
    np.testing.assert_allclose(np.asarray(out8), np.asarray(ref8), rtol=1e-4, atol=1e-4)

    # Case 3: B=5 with bt=4 -> remainder handled via zero-padded batch segments.
    x5 = jax.random.normal(keys[10], (5, n_inp_features, L_SEQ), jnp.float32)
    fwd5 = jax.jit(lambda v: denser_conv_block_bottleneck(v, prep, batch_tile=4))
    out5 = jax.block_until_ready(fwd5(x5))
    ref5 = jax.block_until_ready(reference_forward(x5, params))
    np.testing.assert_allclose(np.asarray(out5), np.asarray(ref5), rtol=1e-4, atol=1e-4)

    print("KERNEL_OK")
</pallas_src>

<mosaic_0001>
module attributes {stable_mosaic.version = 11 : i64} {
  func.func @_denser_block_kernel(%arg0: i32, %arg1: memref<8x256xf32, #tpu.memory_space<vmem>>, %arg2: memref<8x256xf32, #tpu.memory_space<vmem>>, %arg3: memref<8x256xf32, #tpu.memory_space<vmem>>, %arg4: memref<8x256xf32, #tpu.memory_space<vmem>>, %arg5: memref<24x24xf32, #tpu.memory_space<vmem>>, %arg6: memref<24x1xf32, #tpu.memory_space<vmem>>, %arg7: memref<24x256xf32, #tpu.memory_space<vmem>>, %arg8: memref<24x256xf32, #tpu.memory_space<vmem>>, %arg9: memref<8x72xf32, #tpu.memory_space<vmem>>, %arg10: memref<8x1xf32, #tpu.memory_space<vmem>>, %arg11: memref<16x256xf32, #tpu.memory_space<vmem>>) attributes {dimension_semantics = [#tpu.dimension_semantics<parallel>], iteration_bounds = array<i64: 1>, scalar_prefetch = 0 : i64, scratch_operands = 0 : i64, tpu.core_type = #tpu.core_type<tc>, window_params = [{transform_indices = @transform_0, window_bounds = array<i64: 8, 256>}, {pipeline_mode = #tpu.pipeline_mode<synchronous>, transform_indices = @transform_1, window_bounds = array<i64: 8, 256>}, {pipeline_mode = #tpu.pipeline_mode<synchronous>, transform_indices = @transform_2, window_bounds = array<i64: 8, 256>}, {pipeline_mode = #tpu.pipeline_mode<synchronous>, transform_indices = @transform_3, window_bounds = array<i64: 8, 256>}, {pipeline_mode = #tpu.pipeline_mode<synchronous>, transform_indices = @transform_4, window_bounds = array<i64: 24, 24>}, {pipeline_mode = #tpu.pipeline_mode<synchronous>, transform_indices = @transform_5, window_bounds = array<i64: 24, 1>}, {pipeline_mode = #tpu.pipeline_mode<synchronous>, transform_indices = @transform_6, window_bounds = array<i64: 24, 256>}, {pipeline_mode = #tpu.pipeline_mode<synchronous>, transform_indices = @transform_7, window_bounds = array<i64: 24, 256>}, {pipeline_mode = #tpu.pipeline_mode<synchronous>, transform_indices = @transform_8, window_bounds = array<i64: 8, 72>}, {pipeline_mode = #tpu.pipeline_mode<synchronous>, transform_indices = @transform_9, window_bounds = array<i64: 8, 1>}, {transform_indices = @transform_10, window_bounds = array<i64: 16, 256>}]} {
    %c0 = arith.constant 0 : index
    %c0_0 = arith.constant 0 : index
    %0 = vector.load %arg1[%c0, %c0_0] : memref<8x256xf32, #tpu.memory_space<vmem>>, vector<8x256xf32>
    %c0_1 = arith.constant 0 : index
    %c0_2 = arith.constant 0 : index
    %1 = vector.load %arg2[%c0_1, %c0_2] : memref<8x256xf32, #tpu.memory_space<vmem>>, vector<8x256xf32>
    %2 = tpu.iota {dimensions = array<i32: 1>} : vector<1x256xi32>
    %c128_i32 = arith.constant 128 : i32
    %c0_i32 = arith.constant 0 : i32
    %3 = arith.cmpi eq, %c128_i32, %c0_i32 : i32
    %c1_i32 = arith.constant 1 : i32
    %4 = arith.select %3, %c1_i32, %c128_i32 : i32
    %5 = vector.broadcast %4 : i32 to vector<1x256xi32>
    %6 = arith.remsi %2, %5 : vector<1x256xi32>
    %c0_i32_3 = arith.constant 0 : i32
    %7 = vector.broadcast %c0_i32_3 : i32 to vector<1x256xi32>
    %8 = arith.cmpi ne, %6, %7 : vector<1x256xi32>
    %c0_i32_4 = arith.constant 0 : i32
    %9 = vector.broadcast %c0_i32_4 : i32 to vector<1x256xi32>
    %10 = arith.cmpi slt, %6, %9 : vector<1x256xi32>
    %c0_i32_5 = arith.constant 0 : i32
    %11 = arith.cmpi slt, %4, %c0_i32_5 : i32
    %12 = vector.broadcast %11 : i1 to vector<1x256xi1>
    %13 = vector.broadcast %12 : vector<1x256xi1> to vector<1x256xi1>
    %14 = arith.xori %10, %13 : vector<1x256xi1>
    %15 = arith.andi %14, %8 : vector<1x256xi1>
    %16 = vector.broadcast %4 : i32 to vector<1x256xi32>
    %17 = arith.addi %6, %16 : vector<1x256xi32>
    %18 = arith.select %15, %17, %6 : vector<1x256xi1>, vector<1x256xi32>
    %c107_i32 = arith.constant 107 : i32
    %19 = vector.broadcast %c107_i32 : i32 to vector<1x256xi32>
    %20 = arith.cmpi slt, %18, %19 : vector<1x256xi32>
    %c0_6 = arith.constant 0 : index
    %c0_7 = arith.constant 0 : index
    %21 = vector.load %arg3[%c0_6, %c0_7] : memref<8x256xf32, #tpu.memory_space<vmem>>, vector<8x256xf32>
    %c0_8 = arith.constant 0 : index
    %c0_9 = arith.constant 0 : index
    %22 = vector.load %arg4[%c0_8, %c0_9] : memref<8x256xf32, #tpu.memory_space<vmem>>, vector<8x256xf32>
    %23 = tpu.iota {dimensions = array<i32: 0>} : vector<8x1xi32>
    %c4_i32 = arith.constant 4 : i32
    %24 = vector.broadcast %c4_i32 : i32 to vector<8x1xi32>
    %25 = arith.cmpi slt, %23, %24 : vector<8x1xi32>
    %26 = vector.broadcast %25 : vector<8x1xi1> to vector<8x256xi1>
    %27 = vector.broadcast %20 : vector<1x256xi1> to vector<8x256xi1>
    %28 = arith.andi %26, %27 : vector<8x256xi1>
    %cst = arith.constant dense<0.000000e+00> : vector<256xf32>
    %29 = vector.multi_reduction <add>, %0, %cst [0] : vector<8x256xf32> to vector<256xf32>
    %30 = vector.shape_cast %29 : vector<256xf32> to vector<1x256xf32>
    %cst_10 = arith.constant dense<0.000000e+00> : vector<1x8xf32>
    %31 = tpu.matmul %30, %1, %cst_10 {dimension_numbers = #tpu.dot_dimension_numbers<[1], [1], [0], [0], [0, 0, 1, 0], [], []>} : vector<1x256xf32>, vector<8x256xf32>, vector<1x8xf32> -> vector<1x8xf32>
    %cst_11 = arith.constant 0.00233644852 : f32
    %32 = vector.broadcast %cst_11 : f32 to vector<1x8xf32>
    %33 = arith.mulf %31, %32 : vector<1x8xf32>
    %cst_12 = arith.constant dense<0.000000e+00> : vector<1x256xf32>
    %34 = tpu.matmul %33, %1, %cst_12 {dimension_numbers = #tpu.dot_dimension_numbers<[1], [0], [0], [1], [0, 0, 1, 1], [], []>} : vector<1x8xf32>, vector<8x256xf32>, vector<1x256xf32> -> vector<1x256xf32>
    %35 = vector.broadcast %34 : vector<1x256xf32> to vector<8x256xf32>
    %36 = arith.subf %0, %35 : vector<8x256xf32>
    %cst_13 = arith.constant 0.000000e+00 : f32
    %37 = vector.broadcast %cst_13 : f32 to vector<8x256xf32>
    %38 = arith.select %28, %36, %37 : vector<8x256xi1>, vector<8x256xf32>
    %39 = arith.mulf %38, %38 : vector<8x256xf32>
    %cst_14 = arith.constant dense<0.000000e+00> : vector<256xf32>
    %40 = vector.multi_reduction <add>, %39, %cst_14 [0] : vector<8x256xf32> to vector<256xf32>
    %41 = vector.shape_cast %40 : vector<256xf32> to vector<1x256xf32>
    %cst_15 = arith.constant dense<0.000000e+00> : vector<1x8xf32>
    %42 = tpu.matmul %41, %1, %cst_15 {dimension_numbers = #tpu.dot_dimension_numbers<[1], [1], [0], [0], [0, 0, 1, 0], [], []>} : vector<1x256xf32>, vector<8x256xf32>, vector<1x8xf32> -> vector<1x8xf32>
    %cst_16 = arith.constant 0.00233644852 : f32
    %43 = vector.broadcast %cst_16 : f32 to vector<1x8xf32>
    %44 = arith.mulf %42, %43 : vector<1x8xf32>
    %cst_17 = arith.constant 9.99999974E-6 : f32
    %45 = vector.broadcast %cst_17 : f32 to vector<1x8xf32>
    %46 = arith.addf %44, %45 : vector<1x8xf32>
    %47 = math.rsqrt %46 : vector<1x8xf32>
    %cst_18 = arith.constant dense<0.000000e+00> : vector<1x256xf32>
    %48 = tpu.matmul %47, %1, %cst_18 {dimension_numbers = #tpu.dot_dimension_numbers<[1], [0], [0], [1], [0, 0, 1, 1], [], []>} : vector<1x8xf32>, vector<8x256xf32>, vector<1x256xf32> -> vector<1x256xf32>
    %49 = vector.broadcast %48 : vector<1x256xf32> to vector<8x256xf32>
    %50 = arith.mulf %38, %49 : vector<8x256xf32>
    %51 = arith.mulf %50, %21 : vector<8x256xf32>
    %52 = arith.addf %51, %22 : vector<8x256xf32>
    %cst_19 = arith.constant 0.000000e+00 : f32
    %53 = vector.broadcast %cst_19 : f32 to vector<8x256xf32>
    %54 = arith.maximumf %52, %53 : vector<8x256xf32>
    %c0_20 = arith.constant 0 : index
    %c0_21 = arith.constant 0 : index
    %55 = vector.load %arg5[%c0_20, %c0_21] : memref<24x24xf32, #tpu.memory_space<vmem>>, vector<24x24xf32>
    %c0_22 = arith.constant 0 : index
    %c0_23 = arith.constant 0 : index
    %56 = vector.load %arg6[%c0_22, %c0_23] : memref<24x1xf32, #tpu.memory_space<vmem>>, vector<24x1xf32>
    %c1_i32_24 = arith.constant 1 : i32
    %57 = tpu.dynamic_rotate %54 by %c1_i32_24 dim 1 : vector<8x256xf32>, i32 -> vector<8x256xf32>
    %c255_i32 = arith.constant 255 : i32
    %58 = tpu.dynamic_rotate %54 by %c255_i32 dim 1 : vector<8x256xf32>, i32 -> vector<8x256xf32>
    %59 = tpu.concatenate %57, %54, %58 in 0 : vector<8x256xf32>, vector<8x256xf32>, vector<8x256xf32> -> vector<24x256xf32>
    %cst_25 = arith.constant dense<0.000000e+00> : vector<24x256xf32>
    %60 = tpu.matmul %55, %59, %cst_25 {dimension_numbers = #tpu.dot_dimension_numbers<[1], [0], [0], [1], [0, 0, 1, 1], [], []>} : vector<24x24xf32>, vector<24x256xf32>, vector<24x256xf32> -> vector<24x256xf32>
    %61 = vector.broadcast %56 : vector<24x1xf32> to vector<24x256xf32>
    %62 = arith.addf %60, %61 : vector<24x256xf32>
    %cst_26 = arith.constant 0.000000e+00 : f32
    %63 = vector.shape_cast %20 : vector<1x256xi1> to vector<1x256xi1>
    %64 = vector.broadcast %63 : vector<1x256xi1> to vector<24x256xi1>
    %65 = vector.broadcast %cst_26 : f32 to vector<24x256xf32>
    %66 = arith.select %64, %62, %65 : vector<24x256xi1>, vector<24x256xf32>
    %c0_27 = arith.constant 0 : index
    %c0_28 = arith.constant 0 : index
    %67 = vector.load %arg7[%c0_27, %c0_28] : memref<24x256xf32, #tpu.memory_space<vmem>>, vector<24x256xf32>
    %c0_29 = arith.constant 0 : index
    %c0_30 = arith.constant 0 : index
    %68 = vector.load %arg8[%c0_29, %c0_30] : memref<24x256xf32, #tpu.memory_space<vmem>>, vector<24x256xf32>
    %69 = tpu.iota {dimensions = array<i32: 0>} : vector<24x1xi32>
    %c24_i32 = arith.constant 24 : i32
    %70 = vector.broadcast %c24_i32 : i32 to vector<24x1xi32>
    %71 = arith.cmpi slt, %69, %70 : vector<24x1xi32>
    %72 = vector.broadcast %71 : vector<24x1xi1> to vector<24x256xi1>
    %73 = vector.broadcast %20 : vector<1x256xi1> to vector<24x256xi1>
    %74 = arith.andi %72, %73 : vector<24x256xi1>
    %cst_31 = arith.constant dense<0.000000e+00> : vector<256xf32>
    %75 = vector.multi_reduction <add>, %66, %cst_31 [0] : vector<24x256xf32> to vector<256xf32>
    %76 = vector.shape_cast %75 : vector<256xf32> to vector<1x256xf32>
    %cst_32 = arith.constant dense<0.000000e+00> : vector<1x8xf32>
    %77 = tpu.matmul %76, %1, %cst_32 {dimension_numbers = #tpu.dot_dimension_numbers<[1], [1], [0], [0], [0, 0, 1, 0], [], []>} : vector<1x256xf32>, vector<8x256xf32>, vector<1x8xf32> -> vector<1x8xf32>
    %cst_33 = arith.constant 3.89408087E-4 : f32
    %78 = vector.broadcast %cst_33 : f32 to vector<1x8xf32>
    %79 = arith.mulf %77, %78 : vector<1x8xf32>
    %cst_34 = arith.constant dense<0.000000e+00> : vector<1x256xf32>
    %80 = tpu.matmul %79, %1, %cst_34 {dimension_numbers = #tpu.dot_dimension_numbers<[1], [0], [0], [1], [0, 0, 1, 1], [], []>} : vector<1x8xf32>, vector<8x256xf32>, vector<1x256xf32> -> vector<1x256xf32>
    %81 = vector.broadcast %80 : vector<1x256xf32> to vector<24x256xf32>
    %82 = arith.subf %66, %81 : vector<24x256xf32>
    %cst_35 = arith.constant 0.000000e+00 : f32
    %83 = vector.broadcast %cst_35 : f32 to vector<24x256xf32>
    %84 = arith.select %74, %82, %83 : vector<24x256xi1>, vector<24x256xf32>
    %85 = arith.mulf %84, %84 : vector<24x256xf32>
    %cst_36 = arith.constant dense<0.000000e+00> : vector<256xf32>
    %86 = vector.multi_reduction <add>, %85, %cst_36 [0] : vector<24x256xf32> to vector<256xf32>
    %87 = vector.shape_cast %86 : vector<256xf32> to vector<1x256xf32>
    %cst_37 = arith.constant dense<0.000000e+00> : vector<1x8xf32>
    %88 = tpu.matmul %87, %1, %cst_37 {dimension_numbers = #tpu.dot_dimension_numbers<[1], [1], [0], [0], [0, 0, 1, 0], [], []>} : vector<1x256xf32>, vector<8x256xf32>, vector<1x8xf32> -> vector<1x8xf32>
    %cst_38 = arith.constant 3.89408087E-4 : f32
    %89 = vector.broadcast %cst_38 : f32 to vector<1x8xf32>
    %90 = arith.mulf %88, %89 : vector<1x8xf32>
    %cst_39 = arith.constant 9.99999974E-6 : f32
    %91 = vector.broadcast %cst_39 : f32 to vector<1x8xf32>
    %92 = arith.addf %90, %91 : vector<1x8xf32>
    %93 = math.rsqrt %92 : vector<1x8xf32>
    %cst_40 = arith.constant dense<0.000000e+00> : vector<1x256xf32>
    %94 = tpu.matmul %93, %1, %cst_40 {dimension_numbers = #tpu.dot_dimension_numbers<[1], [0], [0], [1], [0, 0, 1, 1], [], []>} : vector<1x8xf32>, vector<8x256xf32>, vector<1x256xf32> -> vector<1x256xf32>
    %95 = vector.broadcast %94 : vector<1x256xf32> to vector<24x256xf32>
    %96 = arith.mulf %84, %95 : vector<24x256xf32>
    %97 = arith.mulf %96, %67 : vector<24x256xf32>
    %98 = arith.addf %97, %68 : vector<24x256xf32>
    %cst_41 = arith.constant 0.000000e+00 : f32
    %99 = vector.broadcast %cst_41 : f32 to vector<24x256xf32>
    %100 = arith.maximumf %98, %99 : vector<24x256xf32>
    %c0_42 = arith.constant 0 : index
    %c0_43 = arith.constant 0 : index
    %101 = vector.load %arg9[%c0_42, %c0_43] : memref<8x72xf32, #tpu.memory_space<vmem>>, vector<8x72xf32>
    %c0_44 = arith.constant 0 : index
    %c0_45 = arith.constant 0 : index
    %102 = vector.load %arg10[%c0_44, %c0_45] : memref<8x1xf32, #tpu.memory_space<vmem>>, vector<8x1xf32>
    %c1_i32_46 = arith.constant 1 : i32
    %103 = tpu.dynamic_rotate %100 by %c1_i32_46 dim 1 : vector<24x256xf32>, i32 -> vector<24x256xf32>
    %c255_i32_47 = arith.constant 255 : i32
    %104 = tpu.dynamic_rotate %100 by %c255_i32_47 dim 1 : vector<24x256xf32>, i32 -> vector<24x256xf32>
    %105 = tpu.concatenate %103, %100, %104 in 0 : vector<24x256xf32>, vector<24x256xf32>, vector<24x256xf32> -> vector<72x256xf32>
    %cst_48 = arith.constant dense<0.000000e+00> : vector<8x256xf32>
    %106 = tpu.matmul %101, %105, %cst_48 {dimension_numbers = #tpu.dot_dimension_numbers<[1], [0], [0], [1], [0, 0, 1, 1], [], []>} : vector<8x72xf32>, vector<72x256xf32>, vector<8x256xf32> -> vector<8x256xf32>
    %107 = vector.broadcast %102 : vector<8x1xf32> to vector<8x256xf32>
    %108 = arith.addf %106, %107 : vector<8x256xf32>
    %cst_49 = arith.constant 0.000000e+00 : f32
    %109 = vector.shape_cast %20 : vector<1x256xi1> to vector<1x256xi1>
    %110 = vector.broadcast %109 : vector<1x256xi1> to vector<8x256xi1>
    %111 = vector.broadcast %cst_49 : f32 to vector<8x256xf32>
    %112 = arith.select %110, %108, %111 : vector<8x256xi1>, vector<8x256xf32>
    %113 = tpu.concatenate %0, %112 in 0 : vector<8x256xf32>, vector<8x256xf32> -> vector<16x256xf32>
    %c0_50 = arith.constant 0 : index
    %c0_51 = arith.constant 0 : index
    %114 = vector.load %arg11[%c0_50, %c0_51] : memref<16x256xf32, #tpu.memory_space<vmem>>, vector<16x256xf32>
    tpu.vector_store %arg11[%c0_50, %c0_51], %113 {strides = array<i32>} : memref<16x256xf32, #tpu.memory_space<vmem>>, vector<16x256xf32>,
    return
  }
  func.func @transform_0(%arg0: i32) -> (i32, i32) {
    %c0_i32 = arith.constant 0 : i32
    %c0_i32_0 = arith.constant 0 : i32
    return %c0_i32, %arg0 : i32, i32
  }
  func.func @transform_1(%arg0: i32) -> (i32, i32) {
    %c0_i32 = arith.constant 0 : i32
    %c0_i32_0 = arith.constant 0 : i32
    %c0_i32_1 = arith.constant 0 : i32
    return %c0_i32, %c0_i32_0 : i32, i32
  }
  func.func @transform_2(%arg0: i32) -> (i32, i32) {
    %c0_i32 = arith.constant 0 : i32
    %c0_i32_0 = arith.constant 0 : i32
    %c0_i32_1 = arith.constant 0 : i32
    return %c0_i32, %c0_i32_0 : i32, i32
  }
  func.func @transform_3(%arg0: i32) -> (i32, i32) {
    %c0_i32 = arith.constant 0 : i32
    %c0_i32_0 = arith.constant 0 : i32
    %c0_i32_1 = arith.constant 0 : i32
    return %c0_i32, %c0_i32_0 : i32, i32
  }
  func.func @transform_4(%arg0: i32) -> (i32, i32) {
    %c0_i32 = arith.constant 0 : i32
    %c0_i32_0 = arith.constant 0 : i32
    %c0_i32_1 = arith.constant 0 : i32
    return %c0_i32, %c0_i32_0 : i32, i32
  }
  func.func @transform_5(%arg0: i32) -> (i32, i32) {
    %c0_i32 = arith.constant 0 : i32
    %c0_i32_0 = arith.constant 0 : i32
    %c0_i32_1 = arith.constant 0 : i32
    return %c0_i32, %c0_i32_0 : i32, i32
  }
  func.func @transform_6(%arg0: i32) -> (i32, i32) {
    %c0_i32 = arith.constant 0 : i32
    %c0_i32_0 = arith.constant 0 : i32
    %c0_i32_1 = arith.constant 0 : i32
    return %c0_i32, %c0_i32_0 : i32, i32
  }
  func.func @transform_7(%arg0: i32) -> (i32, i32) {
    %c0_i32 = arith.constant 0 : i32
    %c0_i32_0 = arith.constant 0 : i32
    %c0_i32_1 = arith.constant 0 : i32
    return %c0_i32, %c0_i32_0 : i32, i32
  }
  func.func @transform_8(%arg0: i32) -> (i32, i32) {
    %c0_i32 = arith.constant 0 : i32
    %c0_i32_0 = arith.constant 0 : i32
    %c0_i32_1 = arith.constant 0 : i32
    return %c0_i32, %c0_i32_0 : i32, i32
  }
  func.func @transform_9(%arg0: i32) -> (i32, i32) {
    %c0_i32 = arith.constant 0 : i32
    %c0_i32_0 = arith.constant 0 : i32
    %c0_i32_1 = arith.constant 0 : i32
    return %c0_i32, %c0_i32_0 : i32, i32
  }
  func.func @transform_10(%arg0: i32) -> (i32, i32) {
    %c0_i32 = arith.constant 0 : i32
    %c0_i32_0 = arith.constant 0 : i32
    return %c0_i32, %arg0 : i32, i32
  }
}

</mosaic_0001>

<llo_original>
// kernel: _lambda_.1
$region0: #{_lambda_.1}
  #allocation0 [shape = 'u32[]', space=smem, size = 0x4, offset = 0x4, fixed_abs, tag = 'smem constant byte address 0x4 - core index']
  #allocation1 [shape = 'u32[144,128]{1,0:T(1,128)}', space=vmem, size = 0x12000, scoped, tag = 'internal scratch']
  %s0 = inlined_call_operand.vmem [shape: f32[8,256], index: 0, kind: input, shape index: {}]
  %s1 = inlined_call_operand.vmem [shape: f32[8,256], index: 1, kind: input, shape index: {}]
  %s2 = inlined_call_operand.vmem [shape: f32[8,256], index: 2, kind: input, shape index: {}]
  %s3 = inlined_call_operand.vmem [shape: f32[8,256], index: 3, kind: input, shape index: {}]
  %s4 = inlined_call_operand.vmem [shape: f32[24,24], index: 4, kind: input, shape index: {}]
  %s5 = inlined_call_operand.vmem [shape: f32[24,1], index: 5, kind: input, shape index: {}]
  %s6 = inlined_call_operand.vmem [shape: f32[24,256], index: 6, kind: input, shape index: {}]
  %s7 = inlined_call_operand.vmem [shape: f32[24,256], index: 7, kind: input, shape index: {}]
  %s8 = inlined_call_operand.vmem [shape: f32[8,72], index: 8, kind: input, shape index: {}]
  %s9 = inlined_call_operand.vmem [shape: f32[8,1], index: 9, kind: input, shape index: {}]
  %s10 = inlined_call_operand.vmem [shape: f32[16,256], index: 10, kind: output, shape index: {}]
  %s11 = sld [smem:[#allocation0]]
  $region50: #{_lambda_.1} parent=0
    _
  %s13 = ssub.s32 1, %s11
  %s14 = scalar_select 0, %s13, %s11
  // Predicated region
  $region2: #{_lambda_.1} parent=0 // pred_check
    _
  $region3: #{_lambda_.1} parent=0 // pred_check_branch
    %16 = sbr.rel (0) target = $region5
  $region4: #{_lambda_.1} parent=0 // pred_region
    _
  $region5: #{_lambda_.1} parent=0 // pred_fallthru
    _
  // Predicated region
  $region6: #{_lambda_.1} parent=0 // pred_check
    _
  $region7: #{_lambda_.1} parent=0 // pred_check_branch
    %18 = sbr.rel (0) target = $region9
  $region8: #{_lambda_.1} parent=0 // pred_region
    _
  $region9: #{_lambda_.1} parent=0 // pred_fallthru
    _
  // Predicated region
  $region10: #{_lambda_.1} parent=0 // pred_check
    _
  $region11: #{_lambda_.1} parent=0 // pred_check_branch
    %20 = sbr.rel (0) target = $region13
  $region12: #{_lambda_.1} parent=0 // pred_region
    _
  $region13: #{_lambda_.1} parent=0 // pred_fallthru
    _
  // Predicated region
  $region14: #{_lambda_.1} parent=0 // pred_check
    _
  $region15: #{_lambda_.1} parent=0 // pred_check_branch
    %22 = sbr.rel (0) target = $region17
  $region16: #{_lambda_.1} parent=0 // pred_region
    _
  $region17: #{_lambda_.1} parent=0 // pred_fallthru
    _
  // Predicated region
  $region18: #{_lambda_.1} parent=0 // pred_check
    _
  $region19: #{_lambda_.1} parent=0 // pred_check_branch
    %24 = sbr.rel (0) target = $region21
  $region20: #{_lambda_.1} parent=0 // pred_region
    _
  $region21: #{_lambda_.1} parent=0 // pred_fallthru
    _
  // Predicated region
  $region22: #{_lambda_.1} parent=0 // pred_check
    _
  $region23: #{_lambda_.1} parent=0 // pred_check_branch
    %26 = sbr.rel (0) target = $region25
  $region24: #{_lambda_.1} parent=0 // pred_region
    _
  $region25: #{_lambda_.1} parent=0 // pred_fallthru
    _
  // Predicated region
  $region26: #{_lambda_.1} parent=0 // pred_check
    _
  $region27: #{_lambda_.1} parent=0 // pred_check_branch
    %28 = sbr.rel (0) target = $region29
  $region28: #{_lambda_.1} parent=0 // pred_region
    _
  $region29: #{_lambda_.1} parent=0 // pred_fallthru
    _
  // Predicated region
  $region30: #{_lambda_.1} parent=0 // pred_check
    _
  $region31: #{_lambda_.1} parent=0 // pred_check_branch
    %30 = sbr.rel (0) target = $region33
  $region32: #{_lambda_.1} parent=0 // pred_region
    _
  $region33: #{_lambda_.1} parent=0 // pred_fallthru
    _
  // Predicated region
  $region34: #{_lambda_.1} parent=0 // pred_check
    _
  $region35: #{_lambda_.1} parent=0 // pred_check_branch
    %32 = sbr.rel (0) target = $region37
  $region36: #{_lambda_.1} parent=0 // pred_region
    _
  $region37: #{_lambda_.1} parent=0 // pred_fallthru
    _
  // Predicated region
  $region38: #{_lambda_.1} parent=0 // pred_check
    _
  $region39: #{_lambda_.1} parent=0 // pred_check_branch
    %34 = sbr.rel (0) target = $region41
  $region40: #{_lambda_.1} parent=0 // pred_region
    _
  $region41: #{_lambda_.1} parent=0 // pred_fallthru
    _
  %v35 = vld [vmem:[%s0] sm:$0xff]
  %v36 = vld [vmem:[%s0 + $0x8] sm:$0xff]
  %v37 = vld [vmem:[%s1] sm:$0xff]
  %v38 = vld [vmem:[%s1 + $0x8] sm:$0xff]
  %v39 = vlaneseq
  %v40 = vand.u32 %v39, 127
  %v41 = vadd.s32 %v40, 128
  %vm42 = vcmp.lt.s32.totalorder %v40, 0
  %v43 = vsub.s32 0, %v40
  %v44 = vsel %vm42, %v43, %v40
  %v45 = vshrl.u32 %v44, 7
  %v46 = vand.u32 %v44, 127
  %v47 = vsub.s32 0, %v46
  %v48 = vsel %vm42, %v47, %v46
  %vm49 = vcmp.lt.s32.totalorder %v41, 0
  %v50 = vsub.s32 0, %v41
  %v51 = vsel %vm49, %v50, %v41
  %v52 = vshrl.u32 %v51, 7
  %v53 = vand.u32 %v51, 127
  %v54 = vsub.s32 0, %v53
  %v55 = vsel %vm49, %v54, %v53
  %vm56 = vcmp.ne.s32.totalorder %v48, 0
  %vm57 = vcmp.ne.s32.totalorder %v55, 0
  %vm58 = vcmp.lt.s32.totalorder %v48, 0
  %vm59 = vcmp.lt.s32.totalorder %v55, 0
  %vm60 = vmand %vm58, %vm56
  %vm61 = vmand %vm59, %vm57
  %v62 = vadd.s32 %v48, 128
  %v63 = vadd.s32 %v55, 128
  %v64 = vsel %vm60, %v62, %v48
  %v65 = vsel %vm61, %v63, %v55
  %vm66 = vcmp.lt.s32.totalorder %v64, 107
  %vm67 = vcmp.lt.s32.totalorder %v65, 107
  %v68 = vld [vmem:[%s2] sm:$0xff]
  %v69 = vld [vmem:[%s2 + $0x8] sm:$0xff]
  %v70 = vld [vmem:[%s3] sm:$0xff]
  %v71 = vld [vmem:[%s3 + $0x8] sm:$0xff]
  %v72 = vlaneseq
  %v73 = vshrl.u32 %v72, 7
  %vm74 = vcmp.lt.s32.totalorder %v73, 4
  %v75 = vsel %vm74, 1, 0
  %vm76 = vcmp.eq.s32.totalorder %v75, 1
  %v77 = vsel %vm66, 1, 0
  %v78 = vsel %vm67, 1, 0
  %vm79 = vcmp.eq.s32.totalorder %v77, 1
  %vm80 = vcmp.eq.s32.totalorder %v78, 1
  %vm81 = vmand %vm76, %vm79
  %vm82 = vmand %vm76, %vm80
  %v83 = vrot.slane %v35, 4
  %v84 = vadd.f32 %v35, %v83
  %v85 = vrot.slane %v84, 2
  %v86 = vadd.f32 %v84, %v85
  %v87 = vrot.slane %v86, 1
  %v88 = vadd.f32 %v86, %v87
  %v89 = vrot.slane %v36, 4
  %v90 = vadd.f32 %v36, %v89
  %v91 = vrot.slane %v90, 2
  %v92 = vadd.f32 %v90, %v91
  %v93 = vrot.slane %v92, 1
  %v94 = vadd.f32 %v92, %v93
  %95 = vmatprep.subr.mxu0 %v38
  %96 = vmatpush1.xpose.msra.mxu0 %v37
  %97 = vmatprep.subr.mxu0 0.0
  %98 = vmatpush1.xpose.msra.mxu0 0.0
  %99 = vmatprep.subr.mxu0 0.0
  %100 = vmatpush1.xpose.msra.mxu0 0.0
  %101 = vmatprep.subr.mxu0 0.0
  %102 = vmatpush1.xpose.msra.mxu0 0.0
  %103 = vmatprep.subr.mxu0 0.0
  %104 = vmatpush1.xpose.msra.mxu0 0.0
  %105 = vmatprep.subr.mxu0 0.0
  %106 = vmatpush1.xpose.msra.mxu0 0.0
  %107 = vmatprep.subr.mxu0 0.0
  %108 = vmatpush1.xpose.msra.mxu0 0.0
  %109 = vmatprep.subr.mxu0 0.0
  %110 = vmatpush1.xpose.msra.mxu0 0.0
  %111 = vmatprep.subr.mxu0 0.0
  %112 = vmatpush1.xpose.msra.mxu0 0.0
  %113 = vmatprep.subr.mxu0 0.0
  %114 = vmatpush1.xpose.msra.mxu0 0.0
  %115 = vmatprep.subr.mxu0 0.0
  %116 = vmatpush1.xpose.msra.mxu0 0.0
  %117 = vmatprep.subr.mxu0 0.0
  %118 = vmatpush1.xpose.msra.mxu0 0.0
  %119 = vmatprep.subr.mxu0 0.0
  %120 = vmatpush1.xpose.msra.mxu0 0.0
  %121 = vmatprep.subr.mxu0 0.0
  %122 = vmatpush1.xpose.msra.mxu0 0.0
  %123 = vmatprep.subr.mxu0 0.0
  %124 = vmatpush1.xpose.msra.mxu0 0.0
  %125 = vmatprep.subr.mxu0 0.0
  %126 = vmatpush1.xpose.msra.mxu0 0.0
  %127 = vmatprep.subr.mxu0 0.0
  %128 = vmatpush1.xpose.msra.mxu0 0.0
  %129 = vmatprep.subr.mxu0 0.0
  %130 = vmatpush1.xpose.msra.mxu0 0.0
  %131 = vmatprep.subr.mxu0 0.0
  %132 = vmatpush1.xpose.msra.mxu0 0.0
  %133 = vmatprep.subr.mxu0 0.0
  %134 = vmatpush1.xpose.msra.mxu0 0.0
  %135 = vmatprep.subr.mxu0 0.0
  %136 = vmatpush1.xpose.msra.mxu0 0.0
  %137 = vmatprep.subr.mxu0 0.0
  %138 = vmatpush1.xpose.msra.mxu0 0.0
  %139 = vmatprep.subr.mxu0 0.0
  %140 = vmatpush1.xpose.msra.mxu0 0.0
  %141 = vmatprep.subr.mxu0 0.0
  %142 = vmatpush1.xpose.msra.mxu0 0.0
  %143 = vmatprep.subr.mxu0 0.0
  %144 = vmatpush1.xpose.msra.mxu0 0.0
  %145 = vmatprep.subr.mxu0 0.0
  %146 = vmatpush1.xpose.msra.mxu0 0.0
  %147 = vmatprep.subr.mxu0 0.0
  %148 = vmatpush1.xpose.msra.mxu0 0.0
  %149 = vmatprep.subr.mxu0 0.0
  %150 = vmatpush1.xpose.msra.mxu0 0.0
  %151 = vmatprep.subr.mxu0 0.0
  %152 = vmatpush1.xpose.msra.mxu0 0.0
  %153 = vmatprep.subr.mxu0 0.0
  %154 = vmatpush1.xpose.msra.mxu0 0.0
  %155 = vmatprep.subr.mxu0 0.0
  %156 = vmatpush1.xpose.msra.mxu0 0.0
  %157 = vmatprep.subr.mxu0 0.0
  %158 = vmatpush1.xpose.msra.mxu0 0.0
  %159 = vmatprep.mubr.f32.mxu0 %v94
  %160 = vmatmul.mubr.f32.gmra.mrb[0].mxu0 %v88
  %v161 = vpop.f32.mrb[0].mxu0
  %v162 = vadd.f32 0.0, %v161
  %v163 = vpop.f32.mrb[0].mxu0
  %164 = vdwg.mxu0
  %v165 = vmul.f32 %v162, 0.0023364485
  %vm166 = vcmask 64512
  %v168 = vsel %vm166, %v165, 0
  %170 = vmatprep.subr.mxu0 %v38
  %171 = vmatpush1.msra.mxu0 %v37
  %172 = vmatprep.subr.mxu0 0.0
  %173 = vmatpush1.msra.mxu0 0.0
  %174 = vmatprep.subr.mxu0 0.0
  %175 = vmatpush1.msra.mxu0 0.0
  %176 = vmatprep.subr.mxu0 0.0
  %177 = vmatpush1.msra.mxu0 0.0
  %178 = vmatprep.subr.mxu0 0.0
  %179 = vmatpush1.msra.mxu0 0.0
  %180 = vmatprep.subr.mxu0 0.0
  %181 = vmatpush1.msra.mxu0 0.0
  %182 = vmatprep.subr.mxu0 0.0
  %183 = vmatpush1.msra.mxu0 0.0
  %184 = vmatprep.subr.mxu0 0.0
  %185 = vmatpush1.msra.mxu0 0.0
  %186 = vmatprep.subr.mxu0 0.0
  %187 = vmatpush1.msra.mxu0 0.0
  %188 = vmatprep.subr.mxu0 0.0
  %189 = vmatpush1.msra.mxu0 0.0
  %190 = vmatprep.subr.mxu0 0.0
  %191 = vmatpush1.msra.mxu0 0.0
  %192 = vmatprep.subr.mxu0 0.0
  %193 = vmatpush1.msra.mxu0 0.0
  %194 = vmatprep.subr.mxu0 0.0
  %195 = vmatpush1.msra.mxu0 0.0
  %196 = vmatprep.subr.mxu0 0.0
  %197 = vmatpush1.msra.mxu0 0.0
  %198 = vmatprep.subr.mxu0 0.0
  %199 = vmatpush1.msra.mxu0 0.0
  %200 = vmatprep.subr.mxu0 0.0
  %201 = vmatpush1.msra.mxu0 0.0
  %202 = vmatprep.subr.mxu0 0.0
  %203 = vmatpush1.msra.mxu0 0.0
  %204 = vmatprep.subr.mxu0 0.0
  %205 = vmatpush1.msra.mxu0 0.0
  %206 = vmatprep.subr.mxu0 0.0
  %207 = vmatpush1.msra.mxu0 0.0
  %208 = vmatprep.subr.mxu0 0.0
  %209 = vmatpush1.msra.mxu0 0.0
  %210 = vmatprep.subr.mxu0 0.0
  %211 = vmatpush1.msra.mxu0 0.0
  %212 = vmatprep.subr.mxu0 0.0
  %213 = vmatpush1.msra.mxu0 0.0
  %214 = vmatprep.subr.mxu0 0.0
  %215 = vmatpush1.msra.mxu0 0.0
  %216 = vmatprep.subr.mxu0 0.0
  %217 = vmatpush1.msra.mxu0 0.0
  %218 = vmatprep.subr.mxu0 0.0
  %219 = vmatpush1.msra.mxu0 0.0
  %220 = vmatprep.subr.mxu0 0.0
  %221 = vmatpush1.msra.mxu0 0.0
  %222 = vmatprep.subr.mxu0 0.0
  %223 = vmatpush1.msra.mxu0 0.0
  %224 = vmatprep.subr.mxu0 0.0
  %225 = vmatpush1.msra.mxu0 0.0
  %226 = vmatprep.subr.mxu0 0.0
  %227 = vmatpush1.msra.mxu0 0.0
  %228 = vmatprep.subr.mxu0 0.0
  %229 = vmatpush1.msra.mxu0 0.0
  %230 = vmatprep.subr.mxu0 0.0
  %231 = vmatpush1.msra.mxu0 0.0
  %232 = vmatprep.subr.mxu0 0.0
  %233 = vmatpush1.msra.mxu0 0.0
  %234 = vmatprep.mubr.f32.mxu0 0.0
  %235 = vmatmul.mubr.f32.gmra.mrb[0].mxu0 %v168
  %v236 = vpop.f32.mrb[0].mxu0
  %v237 = vadd.f32 0.0, %v236
  %v238 = vpop.f32.mrb[0].mxu0
  %v239 = vadd.f32 0.0, %v238
  %240 = vdwg.mxu0
  %v241 = vlaneseq
  %v242 = vshrl.u32 %v241, 7
  %v243 = vsub.s32 0, %v242
  %v244 = vrot.slane %v237, %v243
  %v245 = vlaneseq
  %v246 = vshrl.u32 %v245, 7
  %v247 = vsub.s32 0, %v246
  %v248 = vrot.slane %v239, %v247
  %v249 = vsub.f32 %v35, %v244
  %v250 = vsub.f32 %v36, %v248
  %v251 = vsel %vm81, %v249, 0.0
  %v252 = vsel %vm82, %v250, 0.0
  %v253 = vmul.f32 %v251, %v251
  %v254 = vmul.f32 %v252, %v252
  %v255 = vrot.slane %v253, 4
  %v256 = vadd.f32 %v253, %v255
  %v257 = vrot.slane %v256, 2
  %v258 = vadd.f32 %v256, %v257
  %v259 = vrot.slane %v258, 1
  %v260 = vadd.f32 %v258, %v259
  %v261 = vrot.slane %v254, 4
  %v262 = vadd.f32 %v254, %v261
  %v263 = vrot.slane %v262, 2
  %v264 = vadd.f32 %v262, %v263
  %v265 = vrot.slane %v264, 1
  %v266 = vadd.f32 %v264, %v265
  %267 = vmatprep.subr.mxu0 %v38
  %268 = vmatpush1.xpose.msra.mxu0 %v37
  %269 = vmatprep.subr.mxu0 0.0
  %270 = vmatpush1.xpose.msra.mxu0 0.0
  %271 = vmatprep.subr.mxu0 0.0
  %272 = vmatpush1.xpose.msra.mxu0 0.0
  %273 = vmatprep.subr.mxu0 0.0
  %274 = vmatpush1.xpose.msra.mxu0 0.0
  %275 = vmatprep.subr.mxu0 0.0
  %276 = vmatpush1.xpose.msra.mxu0 0.0
  %277 = vmatprep.subr.mxu0 0.0
  %278 = vmatpush1.xpose.msra.mxu0 0.0
  %279 = vmatprep.subr.mxu0 0.0
  %280 = vmatpush1.xpose.msra.mxu0 0.0
  %281 = vmatprep.subr.mxu0 0.0
  %282 = vmatpush1.xpose.msra.mxu0 0.0
  %283 = vmatprep.subr.mxu0 0.0
  %284 = vmatpush1.xpose.msra.mxu0 0.0
  %285 = vmatprep.subr.mxu0 0.0
  %286 = vmatpush1.xpose.msra.mxu0 0.0
  %287 = vmatprep.subr.mxu0 0.0
  %288 = vmatpush1.xpose.msra.mxu0 0.0
  %289 = vmatprep.subr.mxu0 0.0
  %290 = vmatpush1.xpose.msra.mxu0 0.0
  %291 = vmatprep.subr.mxu0 0.0
  %292 = vmatpush1.xpose.msra.mxu0 0.0
  %293 = vmatprep.subr.mxu0 0.0
  %294 = vmatpush1.xpose.msra.mxu0 0.0
  %295 = vmatprep.subr.mxu0 0.0
  %296 = vmatpush1.xpose.msra.mxu0 0.0
  %297 = vmatprep.subr.mxu0 0.0
  %298 = vmatpush1.xpose.msra.mxu0 0.0
  %299 = vmatprep.subr.mxu0 0.0
  %300 = vmatpush1.xpose.msra.mxu0 0.0
  %301 = vmatprep.subr.mxu0 0.0
  %302 = vmatpush1.xpose.msra.mxu0 0.0
  %303 = vmatprep.subr.mxu0 0.0
  %304 = vmatpush1.xpose.msra.mxu0 0.0
  %305 = vmatprep.subr.mxu0 0.0
  %306 = vmatpush1.xpose.msra.mxu0 0.0
  %307 = vmatprep.subr.mxu0 0.0
  %308 = vmatpush1.xpose.msra.mxu0 0.0
  %309 = vmatprep.subr.mxu0 0.0
  %310 = vmatpush1.xpose.msra.mxu0 0.0
  %311 = vmatprep.subr.mxu0 0.0
  %312 = vmatpush1.xpose.msra.mxu0 0.0
  %313 = vmatprep.subr.mxu0 0.0
  %314 = vmatpush1.xpose.msra.mxu0 0.0
  %315 = vmatprep.subr.mxu0 0.0
  %316 = vmatpush1.xpose.msra.mxu0 0.0
  %317 = vmatprep.subr.mxu0 0.0
  %318 = vmatpush1.xpose.msra.mxu0 0.0
  %319 = vmatprep.subr.mxu0 0.0
  %320 = vmatpush1.xpose.msra.mxu0 0.0
  %321 = vmatprep.subr.mxu0 0.0
  %322 = vmatpush1.xpose.msra.mxu0 0.0
  %323 = vmatprep.subr.mxu0 0.0
  %324 = vmatpush1.xpose.msra.mxu0 0.0
  %325 = vmatprep.subr.mxu0 0.0
  %326 = vmatpush1.xpose.msra.mxu0 0.0
  %327 = vmatprep.subr.mxu0 0.0
  %328 = vmatpush1.xpose.msra.mxu0 0.0
  %329 = vmatprep.subr.mxu0 0.0
  %330 = vmatpush1.xpose.msra.mxu0 0.0
  %331 = vmatprep.mubr.f32.mxu0 %v266
  %332 = vmatmul.mubr.f32.gmra.mrb[0].mxu0 %v260
  %v333 = vpop.f32.mrb[0].mxu0
  %v334 = vadd.f32 0.0, %v333
  %v335 = vpop.f32.mrb[0].mxu0
  %336 = vdwg.mxu0
  %v337 = vmul.f32 %v334, 0.0023364485
  %v338 = vadd.f32 %v337, 1e-05
  %v339 = vrsqrt.pop %v338
  %v341 = vsel %vm166, %v339, 0
  %343 = vmatprep.subr.mxu0 %v38
  %344 = vmatpush1.msra.mxu0 %v37
  %345 = vmatprep.subr.mxu0 0.0
  %346 = vmatpush1.msra.mxu0 0.0
  %347 = vmatprep.subr.mxu0 0.0
  %348 = vmatpush1.msra.mxu0 0.0
  %349 = vmatprep.subr.mxu0 0.0
  %350 = vmatpush1.msra.mxu0 0.0
  %351 = vmatprep.subr.mxu0 0.0
  %352 = vmatpush1.msra.mxu0 0.0
  %353 = vmatprep.subr.mxu0 0.0
  %354 = vmatpush1.msra.mxu0 0.0
  %355 = vmatprep.subr.mxu0 0.0
  %356 = vmatpush1.msra.mxu0 0.0
  %357 = vmatprep.subr.mxu0 0.0
  %358 = vmatpush1.msra.mxu0 0.0
  %359 = vmatprep.subr.mxu0 0.0
  %360 = vmatpush1.msra.mxu0 0.0
  %361 = vmatprep.subr.mxu0 0.0
  %362 = vmatpush1.msra.mxu0 0.0
  %363 = vmatprep.subr.mxu0 0.0
  %364 = vmatpush1.msra.mxu0 0.0
  %365 = vmatprep.subr.mxu0 0.0
  %366 = vmatpush1.msra.mxu0 0.0
  %367 = vmatprep.subr.mxu0 0.0
  %368 = vmatpush1.msra.mxu0 0.0
  %369 = vmatprep.subr.mxu0 0.0
  %370 = vmatpush1.msra.mxu0 0.0
  %371 = vmatprep.subr.mxu0 0.0
  %372 = vmatpush1.msra.mxu0 0.0
  %373 = vmatprep.subr.mxu0 0.0
  %374 = vmatpush1.msra.mxu0 0.0
  %375 = vmatprep.subr.mxu0 0.0
  %376 = vmatpush1.msra.mxu0 0.0
  %377 = vmatprep.subr.mxu0 0.0
  %378 = vmatpush1.msra.mxu0 0.0
  %379 = vmatprep.subr.mxu0 0.0
  %380 = vmatpush1.msra.mxu0 0.0
  %381 = vmatprep.subr.mxu0 0.0
  %382 = vmatpush1.msra.mxu0 0.0
  %383 = vmatprep.subr.mxu0 0.0
  %384 = vmatpush1.msra.mxu0 0.0
  %385 = vmatprep.subr.mxu0 0.0
  %386 = vmatpush1.msra.mxu0 0.0
  %387 = vmatprep.subr.mxu0 0.0
  %388 = vmatpush1.msra.mxu0 0.0
  %389 = vmatprep.subr.mxu0 0.0
  %390 = vmatpush1.msra.mxu0 0.0
  %391 = vmatprep.subr.mxu0 0.0
  %392 = vmatpush1.msra.mxu0 0.0
  %393 = vmatprep.subr.mxu0 0.0
  %394 = vmatpush1.msra.mxu0 0.0
  %395 = vmatprep.subr.mxu0 0.0
  %396 = vmatpush1.msra.mxu0 0.0
  %397 = vmatprep.subr.mxu0 0.0
  %398 = vmatpush1.msra.mxu0 0.0
  %399 = vmatprep.subr.mxu0 0.0
  %400 = vmatpush1.msra.mxu0 0.0
  %401 = vmatprep.subr.mxu0 0.0
  %402 = vmatpush1.msra.mxu0 0.0
  %403 = vmatprep.subr.mxu0 0.0
  %404 = vmatpush1.msra.mxu0 0.0
  %405 = vmatprep.subr.mxu0 0.0
  %406 = vmatpush1.msra.mxu0 0.0
  %407 = vmatprep.mubr.f32.mxu0 0.0
  %408 = vmatmul.mubr.f32.gmra.mrb[0].mxu0 %v341
  %v409 = vpop.f32.mrb[0].mxu0
  %v410 = vadd.f32 0.0, %v409
  %v411 = vpop.f32.mrb[0].mxu0
  %v412 = vadd.f32 0.0, %v411
  %413 = vdwg.mxu0
  %v414 = vlaneseq
  %v415 = vshrl.u32 %v414, 7
  %v416 = vsub.s32 0, %v415
  %v417 = vrot.slane %v410, %v416
  %v418 = vlaneseq
  %v419 = vshrl.u32 %v418, 7
  %v420 = vsub.s32 0, %v419
  %v421 = vrot.slane %v412, %v420
  %v422 = vmul.f32 %v251, %v417
  %v423 = vmul.f32 %v252, %v421
  %v424 = vmul.f32 %v422, %v68
  %v425 = vmul.f32 %v423, %v69
  %v426 = vadd.f32 %v424, %v70
  %v427 = vadd.f32 %v425, %v71
  %v428 = vmax.f32 %v426, 0.0
  %v429 = vmax.f32 %v427, 0.0
  %v430 = vld [vmem:[%s4] sm:$0xff]
  %v431 = vld [vmem:[%s4 + $0x8] sm:$0xff]
  %v432 = vld [vmem:[%s4 + $0x10] sm:$0xff]
  %v433 = vld [vmem:[%s5] sm:$0xff]
  %v434 = vld [vmem:[%s5 + $0x8] sm:$0xff]
  %v435 = vld [vmem:[%s5 + $0x10] sm:$0xff]
  %436 = vrot.lane.b32.xlu0 %v428, 1
  %v437 = vpop.permute.xlu0 %436
  %438 = vrot.lane.b32.xlu0 %v429, 1
  %v439 = vpop.permute.xlu0 %438
  %vm440 = vcmp.lt.s32.totalorder %v40, 1
  %v441 = vsel %vm440, %v437, %v439
  %v442 = vsel %vm440, %v439, %v437
  %443 = vrot.lane.b32.xlu0 %v428, 127
  %v444 = vpop.permute.xlu0 %443
  %445 = vrot.lane.b32.xlu0 %v429, 127
  %v446 = vpop.permute.xlu0 %445
  %vm447 = vcmp.lt.s32.totalorder %v40, 127
  %v448 = vsel %vm447, %v444, %v446
  %v449 = vsel %vm447, %v446, %v444
  %451 = vset.pattern.permute.xlu0 0
  %452 = vperm.xlu0 %451, %v433
  %v453 = vpop.permute.xlu0 %452
  %456 = vset.pattern.permute.xlu0 0
  %457 = vperm.xlu0 %456, %v434
  %v458 = vpop.permute.xlu0 %457
  %461 = vset.pattern.permute.xlu0 0
  %462 = vperm.xlu0 %461, %v435
  %v463 = vpop.permute.xlu0 %462
  %vm465 = vcmask 195584
  %v467 = vsel %vm465, %v430, 0
  %v470 = vsel %vm465, %v431, 0
  %v473 = vsel %vm465, %v432, 0
  %475 = vmatprep.subr.mxu0 %v441
  %476 = vmatpush1.msra.mxu0 %v442
  %477 = vmatprep.subr.mxu0 %v429
  %478 = vmatpush1.msra.mxu0 %v428
  %479 = vmatprep.subr.mxu0 %v449
  %480 = vmatpush1.msra.mxu0 %v448
  %481 = vmatprep.subr.mxu0 0.0
  %482 = vmatpush1.msra.mxu0 0.0
  %483 = vmatprep.subr.mxu0 0.0
  %484 = vmatpush1.msra.mxu0 0.0
  %485 = vmatprep.subr.mxu0 0.0
  %486 = vmatpush1.msra.mxu0 0.0
  %487 = vmatprep.subr.mxu0 0.0
  %488 = vmatpush1.msra.mxu0 0.0
  %489 = vmatprep.subr.mxu0 0.0
  %490 = vmatpush1.msra.mxu0 0.0
  %491 = vmatprep.subr.mxu0 0.0
  %492 = vmatpush1.msra.mxu0 0.0
  %493 = vmatprep.subr.mxu0 0.0
  %494 = vmatpush1.msra.mxu0 0.0
  %495 = vmatprep.subr.mxu0 0.0
  %496 = vmatpush1.msra.mxu0 0.0
  %497 = vmatprep.subr.mxu0 0.0
  %498 = vmatpush1.msra.mxu0 0.0
  %499 = vmatprep.subr.mxu0 0.0
  %500 = vmatpush1.msra.mxu0 0.0
  %501 = vmatprep.subr.mxu0 0.0
  %502 = vmatpush1.msra.mxu0 0.0
  %503 = vmatprep.subr.mxu0 0.0
  %504 = vmatpush1.msra.mxu0 0.0
  %505 = vmatprep.subr.mxu0 0.0
  %506 = vmatpush1.msra.mxu0 0.0
  %507 = vmatprep.subr.mxu0 0.0
  %508 = vmatpush1.msra.mxu0 0.0
  %509 = vmatprep.subr.mxu0 0.0
  %510 = vmatpush1.msra.mxu0 0.0
  %511 = vmatprep.subr.mxu0 0.0
  %512 = vmatpush1.msra.mxu0 0.0
  %513 = vmatprep.subr.mxu0 0.0
  %514 = vmatpush1.msra.mxu0 0.0
  %515 = vmatprep.subr.mxu0 0.0
  %516 = vmatpush1.msra.mxu0 0.0
  %517 = vmatprep.subr.mxu0 0.0
  %518 = vmatpush1.msra.mxu0 0.0
  %519 = vmatprep.subr.mxu0 0.0
  %520 = vmatpush1.msra.mxu0 0.0
  %521 = vmatprep.subr.mxu0 0.0
  %522 = vmatpush1.msra.mxu0 0.0
  %523 = vmatprep.subr.mxu0 0.0
  %524 = vmatpush1.msra.mxu0 0.0
  %525 = vmatprep.subr.mxu0 0.0
  %526 = vmatpush1.msra.mxu0 0.0
  %527 = vmatprep.subr.mxu0 0.0
  %528 = vmatpush1.msra.mxu0 0.0
  %529 = vmatprep.subr.mxu0 0.0
  %530 = vmatpush1.msra.mxu0 0.0
  %531 = vmatprep.subr.mxu0 0.0
  %532 = vmatpush1.msra.mxu0 0.0
  %533 = vmatprep.subr.mxu0 0.0
  %534 = vmatpush1.msra.mxu0 0.0
  %535 = vmatprep.subr.mxu0 0.0
  %536 = vmatpush1.msra.mxu0 0.0
  %537 = vmatprep.subr.mxu0 0.0
  %538 = vmatpush1.msra.mxu0 0.0
  %539 = vmatprep.mubr.f32.mxu0 0.0
  %540 = vmatmul.mubr.f32.gmra.mrb[0].mxu0 %v467
  %v541 = vpop.f32.mrb[0].mxu0
  %v542 = vadd.f32 %v453, %v541
  %v543 = vpop.f32.mrb[0].mxu0
  %v544 = vadd.f32 %v453, %v543
  %545 = vmatprep.mubr.f32.mxu0 0.0
  %546 = vmatmul.mubr.f32.gmra.mrb[0].mxu0 %v470
  %v547 = vpop.f32.mrb[0].mxu0
  %v548 = vadd.f32 %v458, %v547
  %v549 = vpop.f32.mrb[0].mxu0
  %v550 = vadd.f32 %v458, %v549
  %551 = vmatprep.mubr.f32.mxu0 0.0
  %552 = vmatmul.mubr.f32.gmra.mrb[0].mxu0 %v473
  %v553 = vpop.f32.mrb[0].mxu0
  %v554 = vadd.f32 %v463, %v553
  %v555 = vpop.f32.mrb[0].mxu0
  %v556 = vadd.f32 %v463, %v555
  %557 = vdwg.mxu0
  %v558 = vsel %vm79, %v542, 0.0
  %v559 = vsel %vm80, %v544, 0.0
  %v560 = vsel %vm79, %v548, 0.0
  %v561 = vsel %vm80, %v550, 0.0
  %v562 = vsel %vm79, %v554, 0.0
  %v563 = vsel %vm80, %v556, 0.0
  %v564 = vld [vmem:[%s6] sm:$0xff]
  %v565 = vld [vmem:[%s6 + $0x8] sm:$0xff]
  %v566 = vld [vmem:[%s6 + $0x10] sm:$0xff]
  %v567 = vld [vmem:[%s6 + $0x18] sm:$0xff]
  %v568 = vld [vmem:[%s6 + $0x20] sm:$0xff]
  %v569 = vld [vmem:[%s6 + $0x28] sm:$0xff]
  %v570 = vld [vmem:[%s7] sm:$0xff]
  %v571 = vld [vmem:[%s7 + $0x8] sm:$0xff]
  %v572 = vld [vmem:[%s7 + $0x10] sm:$0xff]
  %v573 = vld [vmem:[%s7 + $0x18] sm:$0xff]
  %v574 = vld [vmem:[%s7 + $0x20] sm:$0xff]
  %v575 = vld [vmem:[%s7 + $0x28] sm:$0xff]
  %v576 = vadd.s32 %v73, 8
  %v577 = vadd.s32 %v73, 16
  %vm578 = vcmp.lt.s32.totalorder %v73, 24
  %vm579 = vcmp.lt.s32.totalorder %v576, 24
  %vm580 = vcmp.lt.s32.totalorder %v577, 24
  %v581 = vsel %vm578, 1, 0
  %v582 = vsel %vm579, 1, 0
  %v583 = vsel %vm580, 1, 0
  %vm584 = vcmp.eq.s32.totalorder %v581, 1
  %vm585 = vcmp.eq.s32.totalorder %v582, 1
  %vm586 = vcmp.eq.s32.totalorder %v583, 1
  %vm587 = vmand %vm584, %vm79
  %vm588 = vmand %vm584, %vm80
  %vm589 = vmand %vm585, %vm79
  %vm590 = vmand %vm585, %vm80
  %vm591 = vmand %vm586, %vm79
  %vm592 = vmand %vm586, %vm80
  %v593 = vadd.f32 %v558, %v560
  %v594 = vadd.f32 %v593, %v562
  %v595 = vrot.slane %v594, 4
  %v596 = vadd.f32 %v594, %v595
  %v597 = vrot.slane %v596, 2
  %v598 = vadd.f32 %v596, %v597
  %v599 = vrot.slane %v598, 1
  %v600 = vadd.f32 %v598, %v599
  %v601 = vadd.f32 %v559, %v561
  %v602 = vadd.f32 %v601, %v563
  %v603 = vrot.slane %v602, 4
  %v604 = vadd.f32 %v602, %v603
  %v605 = vrot.slane %v604, 2
  %v606 = vadd.f32 %v604, %v605
  %v607 = vrot.slane %v606, 1
  %v608 = vadd.f32 %v606, %v607
  %609 = vmatprep.subr.mxu0 %v38
  %610 = vmatpush1.xpose.msra.mxu0 %v37
  %611 = vmatprep.subr.mxu0 0.0
  %612 = vmatpush1.xpose.msra.mxu0 0.0
  %613 = vmatprep.subr.mxu0 0.0
  %614 = vmatpush1.xpose.msra.mxu0 0.0
  %615 = vmatprep.subr.mxu0 0.0
  %616 = vmatpush1.xpose.msra.mxu0 0.0
  %617 = vmatprep.subr.mxu0 0.0
  %618 = vmatpush1.xpose.msra.mxu0 0.0
  %619 = vmatprep.subr.mxu0 0.0
  %620 = vmatpush1.xpose.msra.mxu0 0.0
  %621 = vmatprep.subr.mxu0 0.0
  %622 = vmatpush1.xpose.msra.mxu0 0.0
  %623 = vmatprep.subr.mxu0 0.0
  %624 = vmatpush1.xpose.msra.mxu0 0.0
  %625 = vmatprep.subr.mxu0 0.0
  %626 = vmatpush1.xpose.msra.mxu0 0.0
  %627 = vmatprep.subr.mxu0 0.0
  %628 = vmatpush1.xpose.msra.mxu0 0.0
  %629 = vmatprep.subr.mxu0 0.0
  %630 = vmatpush1.xpose.msra.mxu0 0.0
  %631 = vmatprep.subr.mxu0 0.0
  %632 = vmatpush1.xpose.msra.mxu0 0.0
  %633 = vmatprep.subr.mxu0 0.0
  %634 = vmatpush1.xpose.msra.mxu0 0.0
  %635 = vmatprep.subr.mxu0 0.0
  %636 = vmatpush1.xpose.msra.mxu0 0.0
  %637 = vmatprep.subr.mxu0 0.0
  %638 = vmatpush1.xpose.msra.mxu0 0.0
  %639 = vmatprep.subr.mxu0 0.0
  %640 = vmatpush1.xpose.msra.mxu0 0.0
  %641 = vmatprep.subr.mxu0 0.0
  %642 = vmatpush1.xpose.msra.mxu0 0.0
  %643 = vmatprep.subr.mxu0 0.0
  %644 = vmatpush1.xpose.msra.mxu0 0.0
  %645 = vmatprep.subr.mxu0 0.0
  %646 = vmatpush1.xpose.msra.mxu0 0.0
  %647 = vmatprep.subr.mxu0 0.0
  %648 = vmatpush1.xpose.msra.mxu0 0.0
  %649 = vmatprep.subr.mxu0 0.0
  %650 = vmatpush1.xpose.msra.mxu0 0.0
  %651 = vmatprep.subr.mxu0 0.0
  %652 = vmatpush1.xpose.msra.mxu0 0.0
  %653 = vmatprep.subr.mxu0 0.0
  %654 = vmatpush1.xpose.msra.mxu0 0.0
  %655 = vmatprep.subr.mxu0 0.0
  %656 = vmatpush1.xpose.msra.mxu0 0.0
  %657 = vmatprep.subr.mxu0 0.0
  %658 = vmatpush1.xpose.msra.mxu0 0.0
  %659 = vmatprep.subr.mxu0 0.0
  %660 = vmatpush1.xpose.msra.mxu0 0.0
  %661 = vmatprep.subr.mxu0 0.0
  %662 = vmatpush1.xpose.msra.mxu0 0.0
  %663 = vmatprep.subr.mxu0 0.0
  %664 = vmatpush1.xpose.msra.mxu0 0.0
  %665 = vmatprep.subr.mxu0 0.0
  %666 = vmatpush1.xpose.msra.mxu0 0.0
  %667 = vmatprep.subr.mxu0 0.0
  %668 = vmatpush1.xpose.msra.mxu0 0.0
  %669 = vmatprep.subr.mxu0 0.0
  %670 = vmatpush1.xpose.msra.mxu0 0.0
  %671 = vmatprep.subr.mxu0 0.0
  %672 = vmatpush1.xpose.msra.mxu0 0.0
  %673 = vmatprep.mubr.f32.mxu0 %v608
  %674 = vmatmul.mubr.f32.gmra.mrb[0].mxu0 %v600
  %v675 = vpop.f32.mrb[0].mxu0
  %v676 = vadd.f32 0.0, %v675
  %v677 = vpop.f32.mrb[0].mxu0
  %678 = vdwg.mxu0
  %v679 = vmul.f32 %v676, 0.0003894081
  %v681 = vsel %vm166, %v679, 0
  %683 = vmatprep.subr.mxu0 %v38
  %684 = vmatpush1.msra.mxu0 %v37
  %685 = vmatprep.subr.mxu0 0.0
  %686 = vmatpush1.msra.mxu0 0.0
  %687 = vmatprep.subr.mxu0 0.0
  %688 = vmatpush1.msra.mxu0 0.0
  %689 = vmatprep.subr.mxu0 0.0
  %690 = vmatpush1.msra.mxu0 0.0
  %691 = vmatprep.subr.mxu0 0.0
  %692 = vmatpush1.msra.mxu0 0.0
  %693 = vmatprep.subr.mxu0 0.0
  %694 = vmatpush1.msra.mxu0 0.0
  %695 = vmatprep.subr.mxu0 0.0
  %696 = vmatpush1.msra.mxu0 0.0
  %697 = vmatprep.subr.mxu0 0.0
  %698 = vmatpush1.msra.mxu0 0.0
  %699 = vmatprep.subr.mxu0 0.0
  %700 = vmatpush1.msra.mxu0 0.0
  %701 = vmatprep.subr.mxu0 0.0
  %702 = vmatpush1.msra.mxu0 0.0
  %703 = vmatprep.subr.mxu0 0.0
  %704 = vmatpush1.msra.mxu0 0.0
  %705 = vmatprep.subr.mxu0 0.0
  %706 = vmatpush1.msra.mxu0 0.0
  %707 = vmatprep.subr.mxu0 0.0
  %708 = vmatpush1.msra.mxu0 0.0
  %709 = vmatprep.subr.mxu0 0.0
  %710 = vmatpush1.msra.mxu0 0.0
  %711 = vmatprep.subr.mxu0 0.0
  %712 = vmatpush1.msra.mxu0 0.0
  %713 = vmatprep.subr.mxu0 0.0
  %714 = vmatpush1.msra.mxu0 0.0
  %715 = vmatprep.subr.mxu0 0.0
  %716 = vmatpush1.msra.mxu0 0.0
  %717 = vmatprep.subr.mxu0 0.0
  %718 = vmatpush1.msra.mxu0 0.0
  %719 = vmatprep.subr.mxu0 0.0
  %720 = vmatpush1.msra.mxu0 0.0
  %721 = vmatprep.subr.mxu0 0.0
  %722 = vmatpush1.msra.mxu0 0.0
  %723 = vmatprep.subr.mxu0 0.0
  %724 = vmatpush1.msra.mxu0 0.0
  %725 = vmatprep.subr.mxu0 0.0
  %726 = vmatpush1.msra.mxu0 0.0
  %727 = vmatprep.subr.mxu0 0.0
  %728 = vmatpush1.msra.mxu0 0.0
  %729 = vmatprep.subr.mxu0 0.0
  %730 = vmatpush1.msra.mxu0 0.0
  %731 = vmatprep.subr.mxu0 0.0
  %732 = vmatpush1.msra.mxu0 0.0
  %733 = vmatprep.subr.mxu0 0.0
  %734 = vmatpush1.msra.mxu0 0.0
  %735 = vmatprep.subr.mxu0 0.0
  %736 = vmatpush1.msra.mxu0 0.0
  %737 = vmatprep.subr.mxu0 0.0
  %738 = vmatpush1.msra.mxu0 0.0
  %739 = vmatprep.subr.mxu0 0.0
  %740 = vmatpush1.msra.mxu0 0.0
  %741 = vmatprep.subr.mxu0 0.0
  %742 = vmatpush1.msra.mxu0 0.0
  %743 = vmatprep.subr.mxu0 0.0
  %744 = vmatpush1.msra.mxu0 0.0
  %745 = vmatprep.subr.mxu0 0.0
  %746 = vmatpush1.msra.mxu0 0.0
  %747 = vmatprep.mubr.f32.mxu0 0.0
  %748 = vmatmul.mubr.f32.gmra.mrb[0].mxu0 %v681
  %v749 = vpop.f32.mrb[0].mxu0
  %v750 = vadd.f32 0.0, %v749
  %v751 = vpop.f32.mrb[0].mxu0
  %v752 = vadd.f32 0.0, %v751
  %753 = vdwg.mxu0
  %v754 = vlaneseq
  %v755 = vshrl.u32 %v754, 7
  %v756 = vsub.s32 0, %v755
  %v757 = vrot.slane %v750, %v756
  %v758 = vlaneseq
  %v759 = vshrl.u32 %v758, 7
  %v760 = vsub.s32 0, %v759
  %v761 = vrot.slane %v752, %v760
  %v762 = vsub.f32 %v558, %v757
  %v763 = vsub.f32 %v559, %v761
  %v764 = vsub.f32 %v560, %v757
  %v765 = vsub.f32 %v561, %v761
  %v766 = vsub.f32 %v562, %v757
  %v767 = vsub.f32 %v563, %v761
  %v768 = vsel %vm587, %v762, 0.0
  %v769 = vsel %vm588, %v763, 0.0
  %v770 = vsel %vm589, %v764, 0.0
  %v771 = vsel %vm590, %v765, 0.0
  %v772 = vsel %vm591, %v766, 0.0
  %v773 = vsel %vm592, %v767, 0.0
  %v774 = vmul.f32 %v768, %v768
  %v775 = vmul.f32 %v769, %v769
  %v776 = vmul.f32 %v770, %v770
  %v777 = vmul.f32 %v771, %v771
  %v778 = vmul.f32 %v772, %v772
  %v779 = vmul.f32 %v773, %v773
  %v780 = vadd.f32 %v774, %v776
  %v781 = vadd.f32 %v780, %v778
  %v782 = vrot.slane %v781, 4
  %v783 = vadd.f32 %v781, %v782
  %v784 = vrot.slane %v783, 2
  %v785 = vadd.f32 %v783, %v784
  %v786 = vrot.slane %v785, 1
  %v787 = vadd.f32 %v785, %v786
  %v788 = vadd.f32 %v775, %v777
  %v789 = vadd.f32 %v788, %v779
  %v790 = vrot.slane %v789, 4
  %v791 = vadd.f32 %v789, %v790
  %v792 = vrot.slane %v791, 2
  %v793 = vadd.f32 %v791, %v792
  %v794 = vrot.slane %v793, 1
  %v795 = vadd.f32 %v793, %v794
  %796 = vmatprep.subr.mxu0 %v38
  %797 = vmatpush1.xpose.msra.mxu0 %v37
  %798 = vmatprep.subr.mxu0 0.0
  %799 = vmatpush1.xpose.msra.mxu0 0.0
  %800 = vmatprep.subr.mxu0 0.0
  %801 = vmatpush1.xpose.msra.mxu0 0.0
  %802 = vmatprep.subr.mxu0 0.0
  %803 = vmatpush1.xpose.msra.mxu0 0.0
  %804 = vmatprep.subr.mxu0 0.0
  %805 = vmatpush1.xpose.msra.mxu0 0.0
  %806 = vmatprep.subr.mxu0 0.0
  %807 = vmatpush1.xpose.msra.mxu0 0.0
  %808 = vmatprep.subr.mxu0 0.0
  %809 = vmatpush1.xpose.msra.mxu0 0.0
  %810 = vmatprep.subr.mxu0 0.0
  %811 = vmatpush1.xpose.msra.mxu0 0.0
  %812 = vmatprep.subr.mxu0 0.0
  %813 = vmatpush1.xpose.msra.mxu0 0.0
  %814 = vmatprep.subr.mxu0 0.0
  %815 = vmatpush1.xpose.msra.mxu0 0.0
  %816 = vmatprep.subr.mxu0 0.0
  %817 = vmatpush1.xpose.msra.mxu0 0.0
  %818 = vmatprep.subr.mxu0 0.0
  %819 = vmatpush1.xpose.msra.mxu0 0.0
  %820 = vmatprep.subr.mxu0 0.0
  %821 = vmatpush1.xpose.msra.mxu0 0.0
  %822 = vmatprep.subr.mxu0 0.0
  %823 = vmatpush1.xpose.msra.mxu0 0.0
  %824 = vmatprep.subr.mxu0 0.0
  %825 = vmatpush1.xpose.msra.mxu0 0.0
  %826 = vmatprep.subr.mxu0 0.0
  %827 = vmatpush1.xpose.msra.mxu0 0.0
  %828 = vmatprep.subr.mxu0 0.0
  %829 = vmatpush1.xpose.msra.mxu0 0.0
  %830 = vmatprep.subr.mxu0 0.0
  %831 = vmatpush1.xpose.msra.mxu0 0.0
  %832 = vmatprep.subr.mxu0 0.0
  %833 = vmatpush1.xpose.msra.mxu0 0.0
  %834 = vmatprep.subr.mxu0 0.0
  %835 = vmatpush1.xpose.msra.mxu0 0.0
  %836 = vmatprep.subr.mxu0 0.0
  %837 = vmatpush1.xpose.msra.mxu0 0.0
  %838 = vmatprep.subr.mxu0 0.0
  %839 = vmatpush1.xpose.msra.mxu0 0.0
  %840 = vmatprep.subr.mxu0 0.0
  %841 = vmatpush1.xpose.msra.mxu0 0.0
  %842 = vmatprep.subr.mxu0 0.0
  %843 = vmatpush1.xpose.msra.mxu0 0.0
  %844 = vmatprep.subr.mxu0 0.0
  %845 = vmatpush1.xpose.msra.mxu0 0.0
  %846 = vmatprep.subr.mxu0 0.0
  %847 = vmatpush1.xpose.msra.mxu0 0.0
  %848 = vmatprep.subr.mxu0 0.0
  %849 = vmatpush1.xpose.msra.mxu0 0.0
  %850 = vmatprep.subr.mxu0 0.0
  %851 = vmatpush1.xpose.msra.mxu0 0.0
  %852 = vmatprep.subr.mxu0 0.0
  %853 = vmatpush1.xpose.msra.mxu0 0.0
  %854 = vmatprep.subr.mxu0 0.0
  %855 = vmatpush1.xpose.msra.mxu0 0.0
  %856 = vmatprep.subr.mxu0 0.0
  %857 = vmatpush1.xpose.msra.mxu0 0.0
  %858 = vmatprep.subr.mxu0 0.0
  %859 = vmatpush1.xpose.msra.mxu0 0.0
  %860 = vmatprep.mubr.f32.mxu0 %v795
  %861 = vmatmul.mubr.f32.gmra.mrb[0].mxu0 %v787
  %v862 = vpop.f32.mrb[0].mxu0
  %v863 = vadd.f32 0.0, %v862
  %v864 = vpop.f32.mrb[0].mxu0
  %865 = vdwg.mxu0
  %v866 = vmul.f32 %v863, 0.0003894081
  %v867 = vadd.f32 %v866, 1e-05
  %v868 = vrsqrt.pop %v867
  %v870 = vsel %vm166, %v868, 0
  %872 = vmatprep.subr.mxu0 %v38
  %873 = vmatpush1.msra.mxu0 %v37
  %874 = vmatprep.subr.mxu0 0.0
  %875 = vmatpush1.msra.mxu0 0.0
  %876 = vmatprep.subr.mxu0 0.0
  %877 = vmatpush1.msra.mxu0 0.0
  %878 = vmatprep.subr.mxu0 0.0
  %879 = vmatpush1.msra.mxu0 0.0
  %880 = vmatprep.subr.mxu0 0.0
  %881 = vmatpush1.msra.mxu0 0.0
  %882 = vmatprep.subr.mxu0 0.0
  %883 = vmatpush1.msra.mxu0 0.0
  %884 = vmatprep.subr.mxu0 0.0
  %885 = vmatpush1.msra.mxu0 0.0
  %886 = vmatprep.subr.mxu0 0.0
  %887 = vmatpush1.msra.mxu0 0.0
  %888 = vmatprep.subr.mxu0 0.0
  %889 = vmatpush1.msra.mxu0 0.0
  %890 = vmatprep.subr.mxu0 0.0
  %891 = vmatpush1.msra.mxu0 0.0
  %892 = vmatprep.subr.mxu0 0.0
  %893 = vmatpush1.msra.mxu0 0.0
  %894 = vmatprep.subr.mxu0 0.0
  %895 = vmatpush1.msra.mxu0 0.0
  %896 = vmatprep.subr.mxu0 0.0
  %897 = vmatpush1.msra.mxu0 0.0
  %898 = vmatprep.subr.mxu0 0.0
  %899 = vmatpush1.msra.mxu0 0.0
  %900 = vmatprep.subr.mxu0 0.0
  %901 = vmatpush1.msra.mxu0 0.0
  %902 = vmatprep.subr.mxu0 0.0
  %903 = vmatpush1.msra.mxu0 0.0
  %904 = vmatprep.subr.mxu0 0.0
  %905 = vmatpush1.msra.mxu0 0.0
  %906 = vmatprep.subr.mxu0 0.0
  %907 = vmatpush1.msra.mxu0 0.0
  %908 = vmatprep.subr.mxu0 0.0
  %909 = vmatpush1.msra.mxu0 0.0
  %910 = vmatprep.subr.mxu0 0.0
  %911 = vmatpush1.msra.mxu0 0.0
  %912 = vmatprep.subr.mxu0 0.0
  %913 = vmatpush1.msra.mxu0 0.0
  %914 = vmatprep.subr.mxu0 0.0
  %915 = vmatpush1.msra.mxu0 0.0
  %916 = vmatprep.subr.mxu0 0.0
  %917 = vmatpush1.msra.mxu0 0.0
  %918 = vmatprep.subr.mxu0 0.0
  %919 = vmatpush1.msra.mxu0 0.0
  %920 = vmatprep.subr.mxu0 0.0
  %921 = vmatpush1.msra.mxu0 0.0
  %922 = vmatprep.subr.mxu0 0.0
  %923 = vmatpush1.msra.mxu0 0.0
  %924 = vmatprep.subr.mxu0 0.0
  %925 = vmatpush1.msra.mxu0 0.0
  %926 = vmatprep.subr.mxu0 0.0
  %927 = vmatpush1.msra.mxu0 0.0
  %928 = vmatprep.subr.mxu0 0.0
  %929 = vmatpush1.msra.mxu0 0.0
  %930 = vmatprep.subr.mxu0 0.0
  %931 = vmatpush1.msra.mxu0 0.0
  %932 = vmatprep.subr.mxu0 0.0
  %933 = vmatpush1.msra.mxu0 0.0
  %934 = vmatprep.subr.mxu0 0.0
  %935 = vmatpush1.msra.mxu0 0.0
  %936 = vmatprep.mubr.f32.mxu0 0.0
  %937 = vmatmul.mubr.f32.gmra.mrb[0].mxu0 %v870
  %v938 = vpop.f32.mrb[0].mxu0
  %v939 = vadd.f32 0.0, %v938
  %v940 = vpop.f32.mrb[0].mxu0
  %v941 = vadd.f32 0.0, %v940
  %942 = vdwg.mxu0
  %v943 = vlaneseq
  %v944 = vshrl.u32 %v943, 7
  %v945 = vsub.s32 0, %v944
  %v946 = vrot.slane %v939, %v945
  %v947 = vlaneseq
  %v948 = vshrl.u32 %v947, 7
  %v949 = vsub.s32 0, %v948
  %v950 = vrot.slane %v941, %v949
  %v951 = vmul.f32 %v768, %v946
  %v952 = vmul.f32 %v769, %v950
  %v953 = vmul.f32 %v770, %v946
  %v954 = vmul.f32 %v771, %v950
  %v955 = vmul.f32 %v772, %v946
  %v956 = vmul.f32 %v773, %v950
  %v957 = vmul.f32 %v951, %v564
  %v958 = vmul.f32 %v952, %v565
  %v959 = vmul.f32 %v953, %v566
  %v960 = vmul.f32 %v954, %v567
  %v961 = vmul.f32 %v955, %v568
  %v962 = vmul.f32 %v956, %v569
  %v963 = vadd.f32 %v957, %v570
  %v964 = vadd.f32 %v958, %v571
  %v965 = vadd.f32 %v959, %v572
  %v966 = vadd.f32 %v960, %v573
  %v967 = vadd.f32 %v961, %v574
  %v968 = vadd.f32 %v962, %v575
  %v969 = vmax.f32 %v963, 0.0
  %v970 = vmax.f32 %v964, 0.0
  %v971 = vmax.f32 %v965, 0.0
  %v972 = vmax.f32 %v966, 0.0
  %v973 = vmax.f32 %v967, 0.0
  %v974 = vmax.f32 %v968, 0.0
  %v975 = vld [vmem:[%s8] sm:$0xff]
  %v976 = vld [vmem:[%s9] sm:$0xff]
  %977 = vrot.lane.b32.xlu0 %v969, 1
  %v978 = vpop.permute.xlu0 %977
  %979 = vrot.lane.b32.xlu0 %v971, 1
  %v980 = vpop.permute.xlu0 %979
  %981 = vrot.lane.b32.xlu0 %v973, 1
  %v982 = vpop.permute.xlu0 %981
  %983 = vrot.lane.b32.xlu0 %v970, 1
  %v984 = vpop.permute.xlu0 %983
  %985 = vrot.lane.b32.xlu0 %v972, 1
  %v986 = vpop.permute.xlu0 %985
  %987 = vrot.lane.b32.xlu0 %v974, 1
  %v988 = vpop.permute.xlu0 %987
  %v989 = vsel %vm440, %v978, %v984
  %v990 = vsel %vm440, %v980, %v986
  %v991 = vsel %vm440, %v982, %v988
  %v992 = vsel %vm440, %v984, %v978
  %v993 = vsel %vm440, %v986, %v980
  %v994 = vsel %vm440, %v988, %v982
  %995 = vrot.lane.b32.xlu0 %v969, 127
  %v996 = vpop.permute.xlu0 %995
  %997 = vrot.lane.b32.xlu0 %v971, 127
  %v998 = vpop.permute.xlu0 %997
  %999 = vrot.lane.b32.xlu0 %v973, 127
  %v1000 = vpop.permute.xlu0 %999
  %1001 = vrot.lane.b32.xlu0 %v970, 127
  %v1002 = vpop.permute.xlu0 %1001
  %1003 = vrot.lane.b32.xlu0 %v972, 127
  %v1004 = vpop.permute.xlu0 %1003
  %1005 = vrot.lane.b32.xlu0 %v974, 127
  %v1006 = vpop.permute.xlu0 %1005
  %v1007 = vsel %vm447, %v996, %v1002
  %v1008 = vsel %vm447, %v998, %v1004
  %v1009 = vsel %vm447, %v1000, %v1006
  %v1010 = vsel %vm447, %v1002, %v996
  %v1011 = vsel %vm447, %v1004, %v998
  %v1012 = vsel %vm447, %v1006, %v1000
  %1014 = vset.pattern.permute.xlu0 0
  %1015 = vperm.xlu0 %1014, %v976
  %v1016 = vpop.permute.xlu0 %1015
  %vm1018 = vcmask 588800
  %v1020 = vsel %vm1018, %v975, 0
  %1022 = vmatprep.subr.mxu0 %v989
  %1023 = vmatpush1.msra.mxu0 %v992
  %1024 = vmatprep.subr.mxu0 %v990
  %1025 = vmatpush1.msra.mxu0 %v993
  %1026 = vmatprep.subr.mxu0 %v991
  %1027 = vmatpush1.msra.mxu0 %v994
  %1028 = vmatprep.subr.mxu0 %v970
  %1029 = vmatpush1.msra.mxu0 %v969
  %1030 = vmatprep.subr.mxu0 %v972
  %1031 = vmatpush1.msra.mxu0 %v971
  %1032 = vmatprep.subr.mxu0 %v974
  %1033 = vmatpush1.msra.mxu0 %v973
  %1034 = vmatprep.subr.mxu0 %v1010
  %1035 = vmatpush1.msra.mxu0 %v1007
  %1036 = vmatprep.subr.mxu0 %v1011
  %1037 = vmatpush1.msra.mxu0 %v1008
  %1038 = vmatprep.subr.mxu0 %v1012
  %1039 = vmatpush1.msra.mxu0 %v1009
  %1040 = vmatprep.subr.mxu0 0.0
  %1041 = vmatpush1.msra.mxu0 0.0
  %1042 = vmatprep.subr.mxu0 0.0
  %1043 = vmatpush1.msra.mxu0 0.0
  %1044 = vmatprep.subr.mxu0 0.0
  %1045 = vmatpush1.msra.mxu0 0.0
  %1046 = vmatprep.subr.mxu0 0.0
  %1047 = vmatpush1.msra.mxu0 0.0
  %1048 = vmatprep.subr.mxu0 0.0
  %1049 = vmatpush1.msra.mxu0 0.0
  %1050 = vmatprep.subr.mxu0 0.0
  %1051 = vmatpush1.msra.mxu0 0.0
  %1052 = vmatprep.subr.mxu0 0.0
  %1053 = vmatpush1.msra.mxu0 0.0
  %1054 = vmatprep.subr.mxu0 0.0
  %1055 = vmatpush1.msra.mxu0 0.0
  %1056 = vmatprep.subr.mxu0 0.0
  %1057 = vmatpush1.msra.mxu0 0.0
  %1058 = vmatprep.subr.mxu0 0.0
  %1059 = vmatpush1.msra.mxu0 0.0
  %1060 = vmatprep.subr.mxu0 0.0
  %1061 = vmatpush1.msra.mxu0 0.0
  %1062 = vmatprep.subr.mxu0 0.0
  %1063 = vmatpush1.msra.mxu0 0.0
  %1064 = vmatprep.subr.mxu0 0.0
  %1065 = vmatpush1.msra.mxu0 0.0
  %1066 = vmatprep.subr.mxu0 0.0
  %1067 = vmatpush1.msra.mxu0 0.0
  %1068 = vmatprep.subr.mxu0 0.0
  %1069 = vmatpush1.msra.mxu0 0.0
  %1070 = vmatprep.subr.mxu0 0.0
  %1071 = vmatpush1.msra.mxu0 0.0
  %1072 = vmatprep.subr.mxu0 0.0
  %1073 = vmatpush1.msra.mxu0 0.0
  %1074 = vmatprep.subr.mxu0 0.0
  %1075 = vmatpush1.msra.mxu0 0.0
  %1076 = vmatprep.subr.mxu0 0.0
  %1077 = vmatpush1.msra.mxu0 0.0
  %1078 = vmatprep.subr.mxu0 0.0
  %1079 = vmatpush1.msra.mxu0 0.0
  %1080 = vmatprep.subr.mxu0 0.0
  %1081 = vmatpush1.msra.mxu0 0.0
  %1082 = vmatprep.subr.mxu0 0.0
  %1083 = vmatpush1.msra.mxu0 0.0
  %1084 = vmatprep.subr.mxu0 0.0
  %1085 = vmatpush1.msra.mxu0 0.0
  %1086 = vmatprep.mubr.f32.mxu0 0.0
  %1087 = vmatmul.mubr.f32.gmra.mrb[0].mxu0 %v1020
  %v1088 = vpop.f32.mrb[0].mxu0
  %v1089 = vadd.f32 %v1016, %v1088
  %v1090 = vpop.f32.mrb[0].mxu0
  %v1091 = vadd.f32 %v1016, %v1090
  %1092 = vdwg.mxu0
  %v1093 = vsel %vm79, %v1089, 0.0
  %v1094 = vsel %vm80, %v1091, 0.0
  %1095 = vst [vmem:[%s10] sm:$0xff] %v35
  %1096 = vst [vmem:[%s10 + $0x8] sm:$0xff] %v36
  %1097 = vst [vmem:[%s10 + $0x10] sm:$0xff] %v1093
  %1098 = vst [vmem:[%s10 + $0x18] sm:$0xff] %v1094
  // Predicated region
  $region42: #{_lambda_.1} parent=0 // pred_check
    _
  $region43: #{_lambda_.1} parent=0 // pred_check_branch
    %1100 = sbr.rel (0) target = $region45
  $region44: #{_lambda_.1} parent=0 // pred_region
    _
  $region45: #{_lambda_.1} parent=0 // pred_fallthru
    _
  // Predicated region
  $region46: #{_lambda_.1} parent=0 // pred_check
    _
  $region47: #{_lambda_.1} parent=0 // pred_check_branch
    %1102 = sbr.rel (0) target = $region49
  $region48: #{_lambda_.1} parent=0 // pred_region
    _
  $region49: #{_lambda_.1} parent=0 // pred_fallthru
    _

</llo_original>
